<compile_context>
chip_gen: v7x
topology: tpu7x:2x2x1
jax: 0.10.0
libtpu: 0.0.40
codegen_flags: <defaults>
</compile_context>

<pallas_src>
import jax
import jax.numpy as jnp
from jax.experimental import pallas as pl
from jax.experimental.pallas import tpu as pltpu

IN_DIM = 8      # observation dim
HID = 20        # true hidden dim
OUT_DIM = 4     # action dim
H_PAD = 32      # hidden dim padded to sublane multiple
O_PAD = 8       # output dim padded to sublane multiple
SLAB_LANES = 128
MAX_BLK = 4096  # max batch-block (lane) size


def reinforce_kernel(x_ref, slab_ref, o_ref):
    # x_ref: [8, b_blk]  (batch on lanes)
    # slab_ref: [6, 32, 128] packed params:
    #   [0,:, :8]  = W1^T   [1,:, :1] = b1
    #   [2,:, :32] = W2^T   [3,:, :1] = b2
    #   [4,:8,:32] = W3^T   [5,:8,:1] = b3
    x = x_ref[...]

    w1 = slab_ref[0, :, :IN_DIM]          # [32, 8]
    b1 = slab_ref[1, :, :1]               # [32, 1]
    w2 = slab_ref[2, :, :H_PAD]           # [32, 32]
    b2 = slab_ref[3, :, :1]               # [32, 1]
    w3 = slab_ref[4, :O_PAD, :H_PAD]      # [8, 32]
    b3 = slab_ref[5, :O_PAD, :1]          # [8, 1]

    hp = jax.lax.Precision.HIGHEST

    h1 = jnp.dot(w1, x, precision=hp, preferred_element_type=jnp.float32)   # [32, b_blk]
    h1 = jnp.maximum(h1 + b1, 0.0)

    h2 = jnp.dot(w2, h1, precision=hp, preferred_element_type=jnp.float32)  # [32, b_blk]
    h2 = jnp.maximum(h2 + b2, 0.0)

    h3 = jnp.dot(w3, h2, precision=hp, preferred_element_type=jnp.float32)  # [8, b_blk]
    h3 = h3 + b3

    o_ref[...] = (jnp.tanh(h3) * 2.0).astype(o_ref.dtype)


def prepare_params(params):
    """One-time (out of hot path) packing of all weights/biases into a single
    VMEM-resident slab: transpose to [out, in], zero-pad, concatenate."""
    slab = jnp.zeros((6, H_PAD, SLAB_LANES), jnp.float32)
    slab = slab.at[0, :HID, :IN_DIM].set(params["w1"].T)
    slab = slab.at[1, :HID, 0].set(params["b1"][0])
    slab = slab.at[2, :HID, :HID].set(params["w2"].T)
    slab = slab.at[3, :HID, 0].set(params["b2"][0])
    slab = slab.at[4, :OUT_DIM, :HID].set(params["w3"].T)
    slab = slab.at[5, :OUT_DIM, 0].set(params["b3"][0])
    return slab


def _batch_blocks(batch):
    """Pick (padded_batch, block) — static Python ints, decided at trace time."""
    b_pad = ((batch + 127) // 128) * 128
    if b_pad <= 128:
        return b_pad, b_pad                       # tiny batch: 1 grid step
    if b_pad <= 2 * MAX_BLK:
        # split into two equal lane-aligned blocks so both v7x TCs get work
        b_blk = ((b_pad // 2 + 127) // 128) * 128
        return 2 * b_blk, b_blk
    b_blk = MAX_BLK
    return ((b_pad + b_blk - 1) // b_blk) * b_blk, b_blk


@jax.jit
def reinforce_forward(x, slab):
    """x: [B, 8] float32.  slab: output of prepare_params.  Returns [B, 4]."""
    B = x.shape[0]
    b_pad, b_blk = _batch_blocks(B)

    # Batch onto the lane axis: [8, b_pad]. Fuses with the kernel dispatch under jit.
    x_t = jnp.zeros((IN_DIM, b_pad), jnp.float32).at[:, :B].set(x.T)

    cost = pl.CostEstimate(
        flops=2 * B * (IN_DIM * HID + HID * HID + HID * OUT_DIM),
        transcendentals=B * OUT_DIM,
        bytes_accessed=(IN_DIM + O_PAD) * b_pad * 4 + 6 * H_PAD * SLAB_LANES * 4,
    )

    out_t = pl.pallas_call(
        reinforce_kernel,
        out_shape=jax.ShapeDtypeStruct((O_PAD, b_pad), jnp.float32),
        grid=(b_pad // b_blk,),
        in_specs=[
            pl.BlockSpec((IN_DIM, b_blk), lambda i: (0, i)),
            pl.BlockSpec((6, H_PAD, SLAB_LANES), lambda i: (0, 0, 0)),  # resident
        ],
        out_specs=pl.BlockSpec((O_PAD, b_blk), lambda i: (0, i)),
        compiler_params=pltpu.CompilerParams(dimension_semantics=("parallel",)),
        cost_estimate=cost,
    )(x_t, slab)

    # Drop padding, back to [B, 4] (tiny wrapper transpose; kernel stores stay lane-dense).
    return out_t[:OUT_DIM, :B].T


def init_params(key):
    """Deterministic init mimicking PyTorch's default Linear init
    (uniform in [-1/sqrt(fan_in), 1/sqrt(fan_in)]). Weights stored as [in, out]."""
    dims = [(IN_DIM, HID), (HID, HID), (HID, OUT_DIM)]
    params = {}
    keys = jax.random.split(key, 2 * len(dims))
    for i, (fin, fout) in enumerate(dims):
        bound = 1.0 / jnp.sqrt(float(fin))
        w = jax.random.uniform(keys[2 * i], (fin, fout), jnp.float32, -bound, bound)
        b = jax.random.uniform(keys[2 * i + 1], (1, fout), jnp.float32, -bound, bound)
        params[f"w{i + 1}"] = w
        params[f"b{i + 1}"] = b
    return params


def reference_forward(x, params):
    h = jnp.maximum(x @ params["w1"] + params["b1"], 0.0)
    h = jnp.maximum(h @ params["w2"] + params["b2"], 0.0)
    return jnp.tanh(h @ params["w3"] + params["b3"]) * 2.0


if __name__ == "__main__":
    key = jax.random.PRNGKey(0)
    pkey, xkey1, xkey2 = jax.random.split(key, 3)
    params = init_params(pkey)
    slab = jax.block_until_ready(prepare_params(params))   # hoisted out of the hot path

    # Small RL-style batch (LunarLander-like 8-dim observations).
    B = 8
    x = jax.random.normal(xkey1, (B, IN_DIM), dtype=jnp.float32)
    out = jax.block_until_ready(reinforce_forward(x, slab))
    ref = reference_forward(x, params)
    assert out.shape == (B, OUT_DIM)
    assert jnp.allclose(out, ref, atol=1e-5, rtol=1e-5), "mismatch vs reference (B=8)"

    # Larger, non-multiple-of-128 batch: exercises padding + 2-step parallel grid.
    B2 = 300
    x2 = jax.random.normal(xkey2, (B2, IN_DIM), dtype=jnp.float32)
    out2 = jax.block_until_ready(reinforce_forward(x2, slab))
    ref2 = reference_forward(x2, params)
    assert out2.shape == (B2, OUT_DIM)
    assert jnp.allclose(out2, ref2, atol=1e-5, rtol=1e-5), "mismatch vs reference (B=300)"

    print("KERNEL_OK")
</pallas_src>

<mosaic_0001>
module attributes {stable_mosaic.version = 11 : i64} {
  func.func @reinforce_kernel(%arg0: i32, %arg1: memref<8x128xf32, #tpu.memory_space<vmem>>, %arg2: memref<6x32x128xf32, #tpu.memory_space<vmem>>, %arg3: memref<8x128xf32, #tpu.memory_space<vmem>>) attributes {dimension_semantics = [#tpu.dimension_semantics<parallel>], iteration_bounds = array<i64: 1>, scalar_prefetch = 0 : i64, scratch_operands = 0 : i64, tpu.core_type = #tpu.core_type<tc>, window_params = [{transform_indices = @transform_0, window_bounds = array<i64: 8, 128>}, {pipeline_mode = #tpu.pipeline_mode<synchronous>, transform_indices = @transform_1, window_bounds = array<i64: 6, 32, 128>}, {transform_indices = @transform_2, window_bounds = array<i64: 8, 128>}]} {
    %c0 = arith.constant 0 : index
    %c0_0 = arith.constant 0 : index
    %0 = vector.load %arg1[%c0, %c0_0] : memref<8x128xf32, #tpu.memory_space<vmem>>, vector<8x128xf32>
    %c0_1 = arith.constant 0 : index
    %c0_2 = arith.constant 0 : index
    %c0_3 = arith.constant 0 : index
    %1 = vector.load %arg2[%c0_1, %c0_2, %c0_3] : memref<6x32x128xf32, #tpu.memory_space<vmem>>, vector<1x32x8xf32>
    %2 = vector.shape_cast %1 : vector<1x32x8xf32> to vector<32x8xf32>
    %c1 = arith.constant 1 : index
    %c0_4 = arith.constant 0 : index
    %c0_5 = arith.constant 0 : index
    %3 = vector.load %arg2[%c1, %c0_4, %c0_5] : memref<6x32x128xf32, #tpu.memory_space<vmem>>, vector<1x32x1xf32>
    %4 = vector.shape_cast %3 : vector<1x32x1xf32> to vector<32x1xf32>
    %c2 = arith.constant 2 : index
    %c0_6 = arith.constant 0 : index
    %c0_7 = arith.constant 0 : index
    %5 = vector.load %arg2[%c2, %c0_6, %c0_7] : memref<6x32x128xf32, #tpu.memory_space<vmem>>, vector<1x32x32xf32>
    %6 = vector.shape_cast %5 : vector<1x32x32xf32> to vector<32x32xf32>
    %c3 = arith.constant 3 : index
    %c0_8 = arith.constant 0 : index
    %c0_9 = arith.constant 0 : index
    %7 = vector.load %arg2[%c3, %c0_8, %c0_9] : memref<6x32x128xf32, #tpu.memory_space<vmem>>, vector<1x32x1xf32>
    %8 = vector.shape_cast %7 : vector<1x32x1xf32> to vector<32x1xf32>
    %c4 = arith.constant 4 : index
    %c0_10 = arith.constant 0 : index
    %c0_11 = arith.constant 0 : index
    %9 = vector.load %arg2[%c4, %c0_10, %c0_11] : memref<6x32x128xf32, #tpu.memory_space<vmem>>, vector<1x8x32xf32>
    %10 = vector.shape_cast %9 : vector<1x8x32xf32> to vector<8x32xf32>
    %c5 = arith.constant 5 : index
    %c0_12 = arith.constant 0 : index
    %c0_13 = arith.constant 0 : index
    %11 = vector.load %arg2[%c5, %c0_12, %c0_13] : memref<6x32x128xf32, #tpu.memory_space<vmem>>, vector<1x8x1xf32>
    %12 = vector.shape_cast %11 : vector<1x8x1xf32> to vector<8x1xf32>
    %cst = arith.constant dense<0.000000e+00> : vector<32x128xf32>
    %13 = tpu.matmul %2, %0, %cst {dimension_numbers = #tpu.dot_dimension_numbers<[1], [0], [0], [1], [0, 0, 1, 1], [], []>, precision = #tpu.contract_precision<fp32>} : vector<32x8xf32>, vector<8x128xf32>, vector<32x128xf32> -> vector<32x128xf32>
    %14 = vector.broadcast %4 : vector<32x1xf32> to vector<32x128xf32>
    %15 = arith.addf %13, %14 : vector<32x128xf32>
    %cst_14 = arith.constant 0.000000e+00 : f32
    %16 = vector.broadcast %cst_14 : f32 to vector<32x128xf32>
    %17 = arith.maximumf %15, %16 : vector<32x128xf32>
    %cst_15 = arith.constant dense<0.000000e+00> : vector<32x128xf32>
    %18 = tpu.matmul %6, %17, %cst_15 {dimension_numbers = #tpu.dot_dimension_numbers<[1], [0], [0], [1], [0, 0, 1, 1], [], []>, precision = #tpu.contract_precision<fp32>} : vector<32x32xf32>, vector<32x128xf32>, vector<32x128xf32> -> vector<32x128xf32>
    %19 = vector.broadcast %8 : vector<32x1xf32> to vector<32x128xf32>
    %20 = arith.addf %18, %19 : vector<32x128xf32>
    %cst_16 = arith.constant 0.000000e+00 : f32
    %21 = vector.broadcast %cst_16 : f32 to vector<32x128xf32>
    %22 = arith.maximumf %20, %21 : vector<32x128xf32>
    %cst_17 = arith.constant dense<0.000000e+00> : vector<8x128xf32>
    %23 = tpu.matmul %10, %22, %cst_17 {dimension_numbers = #tpu.dot_dimension_numbers<[1], [0], [0], [1], [0, 0, 1, 1], [], []>, precision = #tpu.contract_precision<fp32>} : vector<8x32xf32>, vector<32x128xf32>, vector<8x128xf32> -> vector<8x128xf32>
    %24 = vector.broadcast %12 : vector<8x1xf32> to vector<8x128xf32>
    %25 = arith.addf %23, %24 : vector<8x128xf32>
    %26 = math.tanh %25 : vector<8x128xf32>
    %cst_18 = arith.constant 2.000000e+00 : f32
    %27 = vector.broadcast %cst_18 : f32 to vector<8x128xf32>
    %28 = arith.mulf %26, %27 : vector<8x128xf32>
    %c0_19 = arith.constant 0 : index
    %c0_20 = arith.constant 0 : index
    %29 = vector.load %arg3[%c0_19, %c0_20] : memref<8x128xf32, #tpu.memory_space<vmem>>, vector<8x128xf32>
    tpu.vector_store %arg3[%c0_19, %c0_20], %28 {strides = array<i32>} : memref<8x128xf32, #tpu.memory_space<vmem>>, vector<8x128xf32>,
    return
  }
  func.func @transform_0(%arg0: i32) -> (i32, i32) {
    %c0_i32 = arith.constant 0 : i32
    %c0_i32_0 = arith.constant 0 : i32
    return %c0_i32, %arg0 : i32, i32
  }
  func.func @transform_1(%arg0: i32) -> (i32, i32, i32) {
    %c0_i32 = arith.constant 0 : i32
    %c0_i32_0 = arith.constant 0 : i32
    %c0_i32_1 = arith.constant 0 : i32
    %c0_i32_2 = arith.constant 0 : i32
    return %c0_i32, %c0_i32_0, %c0_i32_1 : i32, i32, i32
  }
  func.func @transform_2(%arg0: i32) -> (i32, i32) {
    %c0_i32 = arith.constant 0 : i32
    %c0_i32_0 = arith.constant 0 : i32
    return %c0_i32, %arg0 : i32, i32
  }
}

</mosaic_0001>

<llo_original>
// kernel: reinforce_forward.1
$region0: #{reinforce_forward.1}
  #allocation0 [shape = 'u32[]', space=smem, size = 0x4, offset = 0x4, fixed_abs, tag = 'smem constant byte address 0x4 - core index']
  #allocation1 [shape = 'u32[144,128]{1,0:T(1,128)}', space=vmem, size = 0x12000, scoped, tag = 'internal scratch']
  %s0 = inlined_call_operand.vmem [shape: f32[8,128], index: 0, kind: input, shape index: {}]
  %s1 = inlined_call_operand.hbm [shape: f32[6,32,128], index: 1, kind: input, shape index: {}]
  %s2 = inlined_call_operand.vmem [shape: f32[8,128], index: 2, kind: output, shape index: {}]
  %s3 = sld [smem:[#allocation0]]
  $region22: #{reinforce_forward.1} parent=0
    _
  %s5 = ssub.s32 1, %s3
  %s6 = scalar_select 0, %s5, %s3
  $region1: #{reinforce_forward.1} parent=0
    #allocation2 [shape = 'u8[98304]{0}', space=vmem, size = 0x18000, scoped, tag = 'input window, operand 1, single buffered']
    #allocation3 [shape = 's32[1]{0}', space=sflag, size = 0x4, scoped, tag = 'scoped memory for reinforce_forward.1']
    %7 = vsyncpa [#allocation3], 0
    // Predicated region
    $region2: #{reinforce_forward.1} parent=1 // pred_check
      _
    $region3: #{reinforce_forward.1} parent=1 // pred_check_branch
      %9 = sbr.rel (0) target = $region5
    $region4: #{reinforce_forward.1} parent=1 // pred_region
      _
    $region5: #{reinforce_forward.1} parent=1 // pred_fallthru
      _
    // Predicated region
    $region6: #{reinforce_forward.1} parent=1 // pred_check
      _
    $region7: #{reinforce_forward.1} parent=1 // pred_check_branch
      %11 = sbr.rel (0) target = $region9
    $region8: #{reinforce_forward.1} parent=1 // pred_region
      %s13 = ssub.s32 3072, 3072
      %14 = vsyncadd [#allocation3], %s13
      %s15 = sshll.u32 [#allocation2], 4
      %s16 = int_to_ptr.vmem [resolvable:$true] %s15
      %21 = dma.hbm_to_vmem [thread:$0]  %s1, 3072, %s16, [#allocation3], 128, 128, 8
    $region9: #{reinforce_forward.1} parent=1 // pred_fallthru
      _
    // Predicated region
    $region10: #{reinforce_forward.1} parent=1 // pred_check
      _
    $region11: #{reinforce_forward.1} parent=1 // pred_check_branch
      %23 = sbr.rel (0) target = $region13
    $region12: #{reinforce_forward.1} parent=1 // pred_region
      %24 = dma.done [#allocation3], 3072
    $region13: #{reinforce_forward.1} parent=1 // pred_fallthru
      _
    %v25 = vld [vmem:[%s0] sm:$0xff]
    %v26 = vld [vmem:[#allocation2] sm:$0xff]
    %v27 = vld [vmem:[#allocation2 + $0x8] sm:$0xff]
    %v28 = vld [vmem:[#allocation2 + $0x10] sm:$0xff]
    %v29 = vld [vmem:[#allocation2 + $0x18] sm:$0xff]
    %s30 = scalar_lea.vmem [#allocation2], 32
    %v31 = vld [vmem:[%s30] sm:$0xff]
    %v32 = vld [vmem:[%s30 + $0x8] sm:$0xff]
    %v33 = vld [vmem:[%s30 + $0x10] sm:$0xff]
    %v34 = vld [vmem:[%s30 + $0x18] sm:$0xff]
    %s35 = scalar_lea.vmem [#allocation2], 64
    %v36 = vld [vmem:[%s35] sm:$0xff]
    %v37 = vld [vmem:[%s35 + $0x8] sm:$0xff]
    %v38 = vld [vmem:[%s35 + $0x10] sm:$0xff]
    %v39 = vld [vmem:[%s35 + $0x18] sm:$0xff]
    %s40 = scalar_lea.vmem [#allocation2], 96
    %v41 = vld [vmem:[%s40] sm:$0xff]
    %v42 = vld [vmem:[%s40 + $0x8] sm:$0xff]
    %v43 = vld [vmem:[%s40 + $0x10] sm:$0xff]
    %v44 = vld [vmem:[%s40 + $0x18] sm:$0xff]
    %s45 = scalar_lea.vmem [#allocation2], 128
    %v46 = vld [vmem:[%s45] sm:$0xff]
    %s47 = scalar_lea.vmem [#allocation2], 160
    %v48 = vld [vmem:[%s47] sm:$0xff]
    %50 = vset.pattern.permute.xlu0 0
    %51 = vperm.xlu0 %50, %v31
    %v52 = vpop.permute.xlu0 %51
    %55 = vset.pattern.permute.xlu0 0
    %56 = vperm.xlu0 %55, %v32
    %v57 = vpop.permute.xlu0 %56
    %60 = vset.pattern.permute.xlu0 0
    %61 = vperm.xlu0 %60, %v33
    %v62 = vpop.permute.xlu0 %61
    %65 = vset.pattern.permute.xlu0 0
    %66 = vperm.xlu0 %65, %v34
    %v67 = vpop.permute.xlu0 %66
    %vm69 = vcmask 64512
    %v71 = vsel %vm69, %v26, 0
    %v74 = vsel %vm69, %v27, 0
    %v77 = vsel %vm69, %v28, 0
    %v80 = vsel %vm69, %v29, 0
    %82 = vmatprep.subr.mxu0 0.0
    %v83 = vand.u32 %v25, 4294901760
    %84 = vmatpush1.msra.mxu0 %v83
    %85 = vmatprep.subr.mxu0 0.0
    %86 = vmatpush1.msra.mxu0 0.0
    %87 = vmatprep.subr.mxu0 0.0
    %88 = vmatpush1.msra.mxu0 0.0
    %89 = vmatprep.subr.mxu0 0.0
    %90 = vmatpush1.msra.mxu0 0.0
    %91 = vmatprep.subr.mxu0 0.0
    %92 = vmatpush1.msra.mxu0 0.0
    %93 = vmatprep.subr.mxu0 0.0
    %94 = vmatpush1.msra.mxu0 0.0
    %95 = vmatprep.subr.mxu0 0.0
    %96 = vmatpush1.msra.mxu0 0.0
    %97 = vmatprep.subr.mxu0 0.0
    %98 = vmatpush1.msra.mxu0 0.0
    %99 = vmatprep.subr.mxu0 0.0
    %100 = vmatpush1.msra.mxu0 0.0
    %101 = vmatprep.subr.mxu0 0.0
    %102 = vmatpush1.msra.mxu0 0.0
    %103 = vmatprep.subr.mxu0 0.0
    %104 = vmatpush1.msra.mxu0 0.0
    %105 = vmatprep.subr.mxu0 0.0
    %106 = vmatpush1.msra.mxu0 0.0
    %107 = vmatprep.subr.mxu0 0.0
    %108 = vmatpush1.msra.mxu0 0.0
    %109 = vmatprep.subr.mxu0 0.0
    %110 = vmatpush1.msra.mxu0 0.0
    %111 = vmatprep.subr.mxu0 0.0
    %112 = vmatpush1.msra.mxu0 0.0
    %113 = vmatprep.subr.mxu0 0.0
    %114 = vmatpush1.msra.mxu0 0.0
    %115 = vmatprep.subr.mxu0 0.0
    %116 = vmatpush1.msra.mxu0 0.0
    %117 = vmatprep.subr.mxu0 0.0
    %118 = vmatpush1.msra.mxu0 0.0
    %119 = vmatprep.subr.mxu0 0.0
    %120 = vmatpush1.msra.mxu0 0.0
    %121 = vmatprep.subr.mxu0 0.0
    %122 = vmatpush1.msra.mxu0 0.0
    %123 = vmatprep.subr.mxu0 0.0
    %124 = vmatpush1.msra.mxu0 0.0
    %125 = vmatprep.subr.mxu0 0.0
    %126 = vmatpush1.msra.mxu0 0.0
    %127 = vmatprep.subr.mxu0 0.0
    %128 = vmatpush1.msra.mxu0 0.0
    %129 = vmatprep.subr.mxu0 0.0
    %130 = vmatpush1.msra.mxu0 0.0
    %131 = vmatprep.subr.mxu0 0.0
    %132 = vmatpush1.msra.mxu0 0.0
    %133 = vmatprep.subr.mxu0 0.0
    %134 = vmatpush1.msra.mxu0 0.0
    %135 = vmatprep.subr.mxu0 0.0
    %136 = vmatpush1.msra.mxu0 0.0
    %137 = vmatprep.subr.mxu0 0.0
    %138 = vmatpush1.msra.mxu0 0.0
    %139 = vmatprep.subr.mxu0 0.0
    %140 = vmatpush1.msra.mxu0 0.0
    %141 = vmatprep.subr.mxu0 0.0
    %142 = vmatpush1.msra.mxu0 0.0
    %143 = vmatprep.subr.mxu0 0.0
    %144 = vmatpush1.msra.mxu0 0.0
    %145 = vmatprep.subr.mxu0 0.0
    %146 = vmatpush1.msra.mxu0 0.0
    %147 = vmatprep.mubr.f32.mxu0 0.0
    %v148 = vand.u32 %v71, 4294901760
    %v149 = vsub.f32 %v71, %v148
    %v150 = vand.u32 %v149, 4294901760
    %v151 = vsub.f32 %v149, %v150
    %v152 = vand.u32 %v151, 4294901760
    %153 = vmatmul.mubr.f32.gmra.mrb[0].mxu0 %v152
    %v154 = vpop.f32.mrb[0].mxu0
    %v155 = vadd.f32 %v52, %v154
    %v156 = vpop.f32.mrb[0].mxu0
    %157 = vmatprep.mubr.f32.mxu0 0.0
    %v158 = vand.u32 %v74, 4294901760
    %v159 = vsub.f32 %v74, %v158
    %v160 = vand.u32 %v159, 4294901760
    %v161 = vsub.f32 %v159, %v160
    %v162 = vand.u32 %v161, 4294901760
    %163 = vmatmul.mubr.f32.gmra.mrb[0].mxu0 %v162
    %v164 = vpop.f32.mrb[0].mxu0
    %v165 = vadd.f32 %v57, %v164
    %v166 = vpop.f32.mrb[0].mxu0
    %167 = vmatprep.mubr.f32.mxu0 0.0
    %v168 = vand.u32 %v77, 4294901760
    %v169 = vsub.f32 %v77, %v168
    %v170 = vand.u32 %v169, 4294901760
    %v171 = vsub.f32 %v169, %v170
    %v172 = vand.u32 %v171, 4294901760
    %173 = vmatmul.mubr.f32.gmra.mrb[0].mxu0 %v172
    %v174 = vpop.f32.mrb[0].mxu0
    %v175 = vadd.f32 %v62, %v174
    %v176 = vpop.f32.mrb[0].mxu0
    %177 = vmatprep.mubr.f32.mxu0 0.0
    %v178 = vand.u32 %v80, 4294901760
    %v179 = vsub.f32 %v80, %v178
    %v180 = vand.u32 %v179, 4294901760
    %v181 = vsub.f32 %v179, %v180
    %v182 = vand.u32 %v181, 4294901760
    %183 = vmatmul.mubr.f32.gmra.mrb[0].mxu0 %v182
    %v184 = vpop.f32.mrb[0].mxu0
    %v185 = vadd.f32 %v67, %v184
    %v186 = vpop.f32.mrb[0].mxu0
    %187 = vdwg.mxu0
    %188 = vmatprep.subr.mxu0 0.0
    %v189 = vand.u32 %v25, 4294901760
    %v190 = vsub.f32 %v25, %v189
    %v191 = vand.u32 %v190, 4294901760
    %v192 = vsub.f32 %v190, %v191
    %v193 = vand.u32 %v192, 4294901760
    %194 = vmatpush1.msra.mxu0 %v193
    %195 = vmatprep.subr.mxu0 0.0
    %196 = vmatpush1.msra.mxu0 0.0
    %197 = vmatprep.subr.mxu0 0.0
    %198 = vmatpush1.msra.mxu0 0.0
    %199 = vmatprep.subr.mxu0 0.0
    %200 = vmatpush1.msra.mxu0 0.0
    %201 = vmatprep.subr.mxu0 0.0
    %202 = vmatpush1.msra.mxu0 0.0
    %203 = vmatprep.subr.mxu0 0.0
    %204 = vmatpush1.msra.mxu0 0.0
    %205 = vmatprep.subr.mxu0 0.0
    %206 = vmatpush1.msra.mxu0 0.0
    %207 = vmatprep.subr.mxu0 0.0
    %208 = vmatpush1.msra.mxu0 0.0
    %209 = vmatprep.subr.mxu0 0.0
    %210 = vmatpush1.msra.mxu0 0.0
    %211 = vmatprep.subr.mxu0 0.0
    %212 = vmatpush1.msra.mxu0 0.0
    %213 = vmatprep.subr.mxu0 0.0
    %214 = vmatpush1.msra.mxu0 0.0
    %215 = vmatprep.subr.mxu0 0.0
    %216 = vmatpush1.msra.mxu0 0.0
    %217 = vmatprep.subr.mxu0 0.0
    %218 = vmatpush1.msra.mxu0 0.0
    %219 = vmatprep.subr.mxu0 0.0
    %220 = vmatpush1.msra.mxu0 0.0
    %221 = vmatprep.subr.mxu0 0.0
    %222 = vmatpush1.msra.mxu0 0.0
    %223 = vmatprep.subr.mxu0 0.0
    %224 = vmatpush1.msra.mxu0 0.0
    %225 = vmatprep.subr.mxu0 0.0
    %226 = vmatpush1.msra.mxu0 0.0
    %227 = vmatprep.subr.mxu0 0.0
    %228 = vmatpush1.msra.mxu0 0.0
    %229 = vmatprep.subr.mxu0 0.0
    %230 = vmatpush1.msra.mxu0 0.0
    %231 = vmatprep.subr.mxu0 0.0
    %232 = vmatpush1.msra.mxu0 0.0
    %233 = vmatprep.subr.mxu0 0.0
    %234 = vmatpush1.msra.mxu0 0.0
    %235 = vmatprep.subr.mxu0 0.0
    %236 = vmatpush1.msra.mxu0 0.0
    %237 = vmatprep.subr.mxu0 0.0
    %238 = vmatpush1.msra.mxu0 0.0
    %239 = vmatprep.subr.mxu0 0.0
    %240 = vmatpush1.msra.mxu0 0.0
    %241 = vmatprep.subr.mxu0 0.0
    %242 = vmatpush1.msra.mxu0 0.0
    %243 = vmatprep.subr.mxu0 0.0
    %244 = vmatpush1.msra.mxu0 0.0
    %245 = vmatprep.subr.mxu0 0.0
    %246 = vmatpush1.msra.mxu0 0.0
    %247 = vmatprep.subr.mxu0 0.0
    %248 = vmatpush1.msra.mxu0 0.0
    %249 = vmatprep.subr.mxu0 0.0
    %250 = vmatpush1.msra.mxu0 0.0
    %251 = vmatprep.subr.mxu0 0.0
    %252 = vmatpush1.msra.mxu0 0.0
    %253 = vmatprep.subr.mxu0 0.0
    %254 = vmatpush1.msra.mxu0 0.0
    %255 = vmatprep.subr.mxu0 0.0
    %256 = vmatpush1.msra.mxu0 0.0
    %257 = vmatprep.mubr.f32.mxu0 0.0
    %v258 = vand.u32 %v71, 4294901760
    %259 = vmatmul.mubr.f32.gmra.mrb[0].mxu0 %v258
    %v260 = vpop.f32.mrb[0].mxu0
    %v261 = vadd.f32 %v155, %v260
    %v262 = vpop.f32.mrb[0].mxu0
    %263 = vmatprep.mubr.f32.mxu0 0.0
    %v264 = vand.u32 %v74, 4294901760
    %265 = vmatmul.mubr.f32.gmra.mrb[0].mxu0 %v264
    %v266 = vpop.f32.mrb[0].mxu0
    %v267 = vadd.f32 %v165, %v266
    %v268 = vpop.f32.mrb[0].mxu0
    %269 = vmatprep.mubr.f32.mxu0 0.0
    %v270 = vand.u32 %v77, 4294901760
    %271 = vmatmul.mubr.f32.gmra.mrb[0].mxu0 %v270
    %v272 = vpop.f32.mrb[0].mxu0
    %v273 = vadd.f32 %v175, %v272
    %v274 = vpop.f32.mrb[0].mxu0
    %275 = vmatprep.mubr.f32.mxu0 0.0
    %v276 = vand.u32 %v80, 4294901760
    %277 = vmatmul.mubr.f32.gmra.mrb[0].mxu0 %v276
    %v278 = vpop.f32.mrb[0].mxu0
    %v279 = vadd.f32 %v185, %v278
    %v280 = vpop.f32.mrb[0].mxu0
    %281 = vdwg.mxu0
    %282 = vmatprep.subr.mxu0 0.0
    %v283 = vand.u32 %v25, 4294901760
    %v284 = vsub.f32 %v25, %v283
    %285 = vmatpush1.msra.mxu0 %v284
    %286 = vmatprep.subr.mxu0 0.0
    %287 = vmatpush1.msra.mxu0 0.0
    %288 = vmatprep.subr.mxu0 0.0
    %289 = vmatpush1.msra.mxu0 0.0
    %290 = vmatprep.subr.mxu0 0.0
    %291 = vmatpush1.msra.mxu0 0.0
    %292 = vmatprep.subr.mxu0 0.0
    %293 = vmatpush1.msra.mxu0 0.0
    %294 = vmatprep.subr.mxu0 0.0
    %295 = vmatpush1.msra.mxu0 0.0
    %296 = vmatprep.subr.mxu0 0.0
    %297 = vmatpush1.msra.mxu0 0.0
    %298 = vmatprep.subr.mxu0 0.0
    %299 = vmatpush1.msra.mxu0 0.0
    %300 = vmatprep.subr.mxu0 0.0
    %301 = vmatpush1.msra.mxu0 0.0
    %302 = vmatprep.subr.mxu0 0.0
    %303 = vmatpush1.msra.mxu0 0.0
    %304 = vmatprep.subr.mxu0 0.0
    %305 = vmatpush1.msra.mxu0 0.0
    %306 = vmatprep.subr.mxu0 0.0
    %307 = vmatpush1.msra.mxu0 0.0
    %308 = vmatprep.subr.mxu0 0.0
    %309 = vmatpush1.msra.mxu0 0.0
    %310 = vmatprep.subr.mxu0 0.0
    %311 = vmatpush1.msra.mxu0 0.0
    %312 = vmatprep.subr.mxu0 0.0
    %313 = vmatpush1.msra.mxu0 0.0
    %314 = vmatprep.subr.mxu0 0.0
    %315 = vmatpush1.msra.mxu0 0.0
    %316 = vmatprep.subr.mxu0 0.0
    %317 = vmatpush1.msra.mxu0 0.0
    %318 = vmatprep.subr.mxu0 0.0
    %319 = vmatpush1.msra.mxu0 0.0
    %320 = vmatprep.subr.mxu0 0.0
    %321 = vmatpush1.msra.mxu0 0.0
    %322 = vmatprep.subr.mxu0 0.0
    %323 = vmatpush1.msra.mxu0 0.0
    %324 = vmatprep.subr.mxu0 0.0
    %325 = vmatpush1.msra.mxu0 0.0
    %326 = vmatprep.subr.mxu0 0.0
    %327 = vmatpush1.msra.mxu0 0.0
    %328 = vmatprep.subr.mxu0 0.0
    %329 = vmatpush1.msra.mxu0 0.0
    %330 = vmatprep.subr.mxu0 0.0
    %331 = vmatpush1.msra.mxu0 0.0
    %332 = vmatprep.subr.mxu0 0.0
    %333 = vmatpush1.msra.mxu0 0.0
    %334 = vmatprep.subr.mxu0 0.0
    %335 = vmatpush1.msra.mxu0 0.0
    %336 = vmatprep.subr.mxu0 0.0
    %337 = vmatpush1.msra.mxu0 0.0
    %338 = vmatprep.subr.mxu0 0.0
    %339 = vmatpush1.msra.mxu0 0.0
    %340 = vmatprep.subr.mxu0 0.0
    %341 = vmatpush1.msra.mxu0 0.0
    %342 = vmatprep.subr.mxu0 0.0
    %343 = vmatpush1.msra.mxu0 0.0
    %344 = vmatprep.subr.mxu0 0.0
    %345 = vmatpush1.msra.mxu0 0.0
    %346 = vmatprep.subr.mxu0 0.0
    %347 = vmatpush1.msra.mxu0 0.0
    %348 = vmatprep.mubr.f32.mxu0 0.0
    %v349 = vand.u32 %v71, 4294901760
    %v350 = vsub.f32 %v71, %v349
    %351 = vmatmul.mubr.f32.gmra.mrb[0].mxu0 %v350
    %v352 = vpop.f32.mrb[0].mxu0
    %v353 = vadd.f32 %v261, %v352
    %v354 = vpop.f32.mrb[0].mxu0
    %355 = vmatprep.mubr.f32.mxu0 0.0
    %v356 = vand.u32 %v74, 4294901760
    %v357 = vsub.f32 %v74, %v356
    %358 = vmatmul.mubr.f32.gmra.mrb[0].mxu0 %v357
    %v359 = vpop.f32.mrb[0].mxu0
    %v360 = vadd.f32 %v267, %v359
    %v361 = vpop.f32.mrb[0].mxu0
    %362 = vmatprep.mubr.f32.mxu0 0.0
    %v363 = vand.u32 %v77, 4294901760
    %v364 = vsub.f32 %v77, %v363
    %365 = vmatmul.mubr.f32.gmra.mrb[0].mxu0 %v364
    %v366 = vpop.f32.mrb[0].mxu0
    %v367 = vadd.f32 %v273, %v366
    %v368 = vpop.f32.mrb[0].mxu0
    %369 = vmatprep.mubr.f32.mxu0 0.0
    %v370 = vand.u32 %v80, 4294901760
    %v371 = vsub.f32 %v80, %v370
    %372 = vmatmul.mubr.f32.gmra.mrb[0].mxu0 %v371
    %v373 = vpop.f32.mrb[0].mxu0
    %v374 = vadd.f32 %v279, %v373
    %v375 = vpop.f32.mrb[0].mxu0
    %376 = vdwg.mxu0
    %377 = vmatprep.subr.mxu0 0.0
    %v378 = vand.u32 %v25, 4294901760
    %379 = vmatpush1.msra.mxu0 %v378
    %380 = vmatprep.subr.mxu0 0.0
    %381 = vmatpush1.msra.mxu0 0.0
    %382 = vmatprep.subr.mxu0 0.0
    %383 = vmatpush1.msra.mxu0 0.0
    %384 = vmatprep.subr.mxu0 0.0
    %385 = vmatpush1.msra.mxu0 0.0
    %386 = vmatprep.subr.mxu0 0.0
    %387 = vmatpush1.msra.mxu0 0.0
    %388 = vmatprep.subr.mxu0 0.0
    %389 = vmatpush1.msra.mxu0 0.0
    %390 = vmatprep.subr.mxu0 0.0
    %391 = vmatpush1.msra.mxu0 0.0
    %392 = vmatprep.subr.mxu0 0.0
    %393 = vmatpush1.msra.mxu0 0.0
    %394 = vmatprep.subr.mxu0 0.0
    %395 = vmatpush1.msra.mxu0 0.0
    %396 = vmatprep.subr.mxu0 0.0
    %397 = vmatpush1.msra.mxu0 0.0
    %398 = vmatprep.subr.mxu0 0.0
    %399 = vmatpush1.msra.mxu0 0.0
    %400 = vmatprep.subr.mxu0 0.0
    %401 = vmatpush1.msra.mxu0 0.0
    %402 = vmatprep.subr.mxu0 0.0
    %403 = vmatpush1.msra.mxu0 0.0
    %404 = vmatprep.subr.mxu0 0.0
    %405 = vmatpush1.msra.mxu0 0.0
    %406 = vmatprep.subr.mxu0 0.0
    %407 = vmatpush1.msra.mxu0 0.0
    %408 = vmatprep.subr.mxu0 0.0
    %409 = vmatpush1.msra.mxu0 0.0
    %410 = vmatprep.subr.mxu0 0.0
    %411 = vmatpush1.msra.mxu0 0.0
    %412 = vmatprep.subr.mxu0 0.0
    %413 = vmatpush1.msra.mxu0 0.0
    %414 = vmatprep.subr.mxu0 0.0
    %415 = vmatpush1.msra.mxu0 0.0
    %416 = vmatprep.subr.mxu0 0.0
    %417 = vmatpush1.msra.mxu0 0.0
    %418 = vmatprep.subr.mxu0 0.0
    %419 = vmatpush1.msra.mxu0 0.0
    %420 = vmatprep.subr.mxu0 0.0
    %421 = vmatpush1.msra.mxu0 0.0
    %422 = vmatprep.subr.mxu0 0.0
    %423 = vmatpush1.msra.mxu0 0.0
    %424 = vmatprep.subr.mxu0 0.0
    %425 = vmatpush1.msra.mxu0 0.0
    %426 = vmatprep.subr.mxu0 0.0
    %427 = vmatpush1.msra.mxu0 0.0
    %428 = vmatprep.subr.mxu0 0.0
    %429 = vmatpush1.msra.mxu0 0.0
    %430 = vmatprep.subr.mxu0 0.0
    %431 = vmatpush1.msra.mxu0 0.0
    %432 = vmatprep.subr.mxu0 0.0
    %433 = vmatpush1.msra.mxu0 0.0
    %434 = vmatprep.subr.mxu0 0.0
    %435 = vmatpush1.msra.mxu0 0.0
    %436 = vmatprep.subr.mxu0 0.0
    %437 = vmatpush1.msra.mxu0 0.0
    %438 = vmatprep.subr.mxu0 0.0
    %439 = vmatpush1.msra.mxu0 0.0
    %440 = vmatprep.subr.mxu0 0.0
    %441 = vmatpush1.msra.mxu0 0.0
    %442 = vmatprep.mubr.f32.mxu0 0.0
    %v443 = vand.u32 %v71, 4294901760
    %v444 = vsub.f32 %v71, %v443
    %v445 = vand.u32 %v444, 4294901760
    %446 = vmatmul.mubr.f32.gmra.mrb[0].mxu0 %v445
    %v447 = vpop.f32.mrb[0].mxu0
    %v448 = vadd.f32 %v353, %v447
    %v449 = vpop.f32.mrb[0].mxu0
    %450 = vmatprep.mubr.f32.mxu0 0.0
    %v451 = vand.u32 %v74, 4294901760
    %v452 = vsub.f32 %v74, %v451
    %v453 = vand.u32 %v452, 4294901760
    %454 = vmatmul.mubr.f32.gmra.mrb[0].mxu0 %v453
    %v455 = vpop.f32.mrb[0].mxu0
    %v456 = vadd.f32 %v360, %v455
    %v457 = vpop.f32.mrb[0].mxu0
    %458 = vmatprep.mubr.f32.mxu0 0.0
    %v459 = vand.u32 %v77, 4294901760
    %v460 = vsub.f32 %v77, %v459
    %v461 = vand.u32 %v460, 4294901760
    %462 = vmatmul.mubr.f32.gmra.mrb[0].mxu0 %v461
    %v463 = vpop.f32.mrb[0].mxu0
    %v464 = vadd.f32 %v367, %v463
    %v465 = vpop.f32.mrb[0].mxu0
    %466 = vmatprep.mubr.f32.mxu0 0.0
    %v467 = vand.u32 %v80, 4294901760
    %v468 = vsub.f32 %v80, %v467
    %v469 = vand.u32 %v468, 4294901760
    %470 = vmatmul.mubr.f32.gmra.mrb[0].mxu0 %v469
    %v471 = vpop.f32.mrb[0].mxu0
    %v472 = vadd.f32 %v374, %v471
    %v473 = vpop.f32.mrb[0].mxu0
    %474 = vdwg.mxu0
    %475 = vmatprep.subr.mxu0 0.0
    %v476 = vand.u32 %v25, 4294901760
    %v477 = vsub.f32 %v25, %v476
    %v478 = vand.u32 %v477, 4294901760
    %479 = vmatpush1.msra.mxu0 %v478
    %480 = vmatprep.subr.mxu0 0.0
    %481 = vmatpush1.msra.mxu0 0.0
    %482 = vmatprep.subr.mxu0 0.0
    %483 = vmatpush1.msra.mxu0 0.0
    %484 = vmatprep.subr.mxu0 0.0
    %485 = vmatpush1.msra.mxu0 0.0
    %486 = vmatprep.subr.mxu0 0.0
    %487 = vmatpush1.msra.mxu0 0.0
    %488 = vmatprep.subr.mxu0 0.0
    %489 = vmatpush1.msra.mxu0 0.0
    %490 = vmatprep.subr.mxu0 0.0
    %491 = vmatpush1.msra.mxu0 0.0
    %492 = vmatprep.subr.mxu0 0.0
    %493 = vmatpush1.msra.mxu0 0.0
    %494 = vmatprep.subr.mxu0 0.0
    %495 = vmatpush1.msra.mxu0 0.0
    %496 = vmatprep.subr.mxu0 0.0
    %497 = vmatpush1.msra.mxu0 0.0
    %498 = vmatprep.subr.mxu0 0.0
    %499 = vmatpush1.msra.mxu0 0.0
    %500 = vmatprep.subr.mxu0 0.0
    %501 = vmatpush1.msra.mxu0 0.0
    %502 = vmatprep.subr.mxu0 0.0
    %503 = vmatpush1.msra.mxu0 0.0
    %504 = vmatprep.subr.mxu0 0.0
    %505 = vmatpush1.msra.mxu0 0.0
    %506 = vmatprep.subr.mxu0 0.0
    %507 = vmatpush1.msra.mxu0 0.0
    %508 = vmatprep.subr.mxu0 0.0
    %509 = vmatpush1.msra.mxu0 0.0
    %510 = vmatprep.subr.mxu0 0.0
    %511 = vmatpush1.msra.mxu0 0.0
    %512 = vmatprep.subr.mxu0 0.0
    %513 = vmatpush1.msra.mxu0 0.0
    %514 = vmatprep.subr.mxu0 0.0
    %515 = vmatpush1.msra.mxu0 0.0
    %516 = vmatprep.subr.mxu0 0.0
    %517 = vmatpush1.msra.mxu0 0.0
    %518 = vmatprep.subr.mxu0 0.0
    %519 = vmatpush1.msra.mxu0 0.0
    %520 = vmatprep.subr.mxu0 0.0
    %521 = vmatpush1.msra.mxu0 0.0
    %522 = vmatprep.subr.mxu0 0.0
    %523 = vmatpush1.msra.mxu0 0.0
    %524 = vmatprep.subr.mxu0 0.0
    %525 = vmatpush1.msra.mxu0 0.0
    %526 = vmatprep.subr.mxu0 0.0
    %527 = vmatpush1.msra.mxu0 0.0
    %528 = vmatprep.subr.mxu0 0.0
    %529 = vmatpush1.msra.mxu0 0.0
    %530 = vmatprep.subr.mxu0 0.0
    %531 = vmatpush1.msra.mxu0 0.0
    %532 = vmatprep.subr.mxu0 0.0
    %533 = vmatpush1.msra.mxu0 0.0
    %534 = vmatprep.subr.mxu0 0.0
    %535 = vmatpush1.msra.mxu0 0.0
    %536 = vmatprep.subr.mxu0 0.0
    %537 = vmatpush1.msra.mxu0 0.0
    %538 = vmatprep.subr.mxu0 0.0
    %539 = vmatpush1.msra.mxu0 0.0
    %540 = vmatprep.subr.mxu0 0.0
    %541 = vmatpush1.msra.mxu0 0.0
    %542 = vmatprep.mubr.f32.mxu0 0.0
    %v543 = vand.u32 %v71, 4294901760
    %544 = vmatmul.mubr.f32.gmra.mrb[0].mxu0 %v543
    %v545 = vpop.f32.mrb[0].mxu0
    %v546 = vadd.f32 %v448, %v545
    %v547 = vpop.f32.mrb[0].mxu0
    %548 = vmatprep.mubr.f32.mxu0 0.0
    %v549 = vand.u32 %v74, 4294901760
    %550 = vmatmul.mubr.f32.gmra.mrb[0].mxu0 %v549
    %v551 = vpop.f32.mrb[0].mxu0
    %v552 = vadd.f32 %v456, %v551
    %v553 = vpop.f32.mrb[0].mxu0
    %554 = vmatprep.mubr.f32.mxu0 0.0
    %v555 = vand.u32 %v77, 4294901760
    %556 = vmatmul.mubr.f32.gmra.mrb[0].mxu0 %v555
    %v557 = vpop.f32.mrb[0].mxu0
    %v558 = vadd.f32 %v464, %v557
    %v559 = vpop.f32.mrb[0].mxu0
    %560 = vmatprep.mubr.f32.mxu0 0.0
    %v561 = vand.u32 %v80, 4294901760
    %562 = vmatmul.mubr.f32.gmra.mrb[0].mxu0 %v561
    %v563 = vpop.f32.mrb[0].mxu0
    %v564 = vadd.f32 %v472, %v563
    %v565 = vpop.f32.mrb[0].mxu0
    %566 = vdwg.mxu0
    %567 = vmatprep.subr.mxu0 0.0
    %v568 = vand.u32 %v25, 4294901760
    %569 = vmatpush1.msra.mxu0 %v568
    %570 = vmatprep.subr.mxu0 0.0
    %571 = vmatpush1.msra.mxu0 0.0
    %572 = vmatprep.subr.mxu0 0.0
    %573 = vmatpush1.msra.mxu0 0.0
    %574 = vmatprep.subr.mxu0 0.0
    %575 = vmatpush1.msra.mxu0 0.0
    %576 = vmatprep.subr.mxu0 0.0
    %577 = vmatpush1.msra.mxu0 0.0
    %578 = vmatprep.subr.mxu0 0.0
    %579 = vmatpush1.msra.mxu0 0.0
    %580 = vmatprep.subr.mxu0 0.0
    %581 = vmatpush1.msra.mxu0 0.0
    %582 = vmatprep.subr.mxu0 0.0
    %583 = vmatpush1.msra.mxu0 0.0
    %584 = vmatprep.subr.mxu0 0.0
    %585 = vmatpush1.msra.mxu0 0.0
    %586 = vmatprep.subr.mxu0 0.0
    %587 = vmatpush1.msra.mxu0 0.0
    %588 = vmatprep.subr.mxu0 0.0
    %589 = vmatpush1.msra.mxu0 0.0
    %590 = vmatprep.subr.mxu0 0.0
    %591 = vmatpush1.msra.mxu0 0.0
    %592 = vmatprep.subr.mxu0 0.0
    %593 = vmatpush1.msra.mxu0 0.0
    %594 = vmatprep.subr.mxu0 0.0
    %595 = vmatpush1.msra.mxu0 0.0
    %596 = vmatprep.subr.mxu0 0.0
    %597 = vmatpush1.msra.mxu0 0.0
    %598 = vmatprep.subr.mxu0 0.0
    %599 = vmatpush1.msra.mxu0 0.0
    %600 = vmatprep.subr.mxu0 0.0
    %601 = vmatpush1.msra.mxu0 0.0
    %602 = vmatprep.subr.mxu0 0.0
    %603 = vmatpush1.msra.mxu0 0.0
    %604 = vmatprep.subr.mxu0 0.0
    %605 = vmatpush1.msra.mxu0 0.0
    %606 = vmatprep.subr.mxu0 0.0
    %607 = vmatpush1.msra.mxu0 0.0
    %608 = vmatprep.subr.mxu0 0.0
    %609 = vmatpush1.msra.mxu0 0.0
    %610 = vmatprep.subr.mxu0 0.0
    %611 = vmatpush1.msra.mxu0 0.0
    %612 = vmatprep.subr.mxu0 0.0
    %613 = vmatpush1.msra.mxu0 0.0
    %614 = vmatprep.subr.mxu0 0.0
    %615 = vmatpush1.msra.mxu0 0.0
    %616 = vmatprep.subr.mxu0 0.0
    %617 = vmatpush1.msra.mxu0 0.0
    %618 = vmatprep.subr.mxu0 0.0
    %619 = vmatpush1.msra.mxu0 0.0
    %620 = vmatprep.subr.mxu0 0.0
    %621 = vmatpush1.msra.mxu0 0.0
    %622 = vmatprep.subr.mxu0 0.0
    %623 = vmatpush1.msra.mxu0 0.0
    %624 = vmatprep.subr.mxu0 0.0
    %625 = vmatpush1.msra.mxu0 0.0
    %626 = vmatprep.subr.mxu0 0.0
    %627 = vmatpush1.msra.mxu0 0.0
    %628 = vmatprep.subr.mxu0 0.0
    %629 = vmatpush1.msra.mxu0 0.0
    %630 = vmatprep.subr.mxu0 0.0
    %631 = vmatpush1.msra.mxu0 0.0
    %632 = vmatprep.mubr.f32.mxu0 0.0
    %v633 = vand.u32 %v71, 4294901760
    %634 = vmatmul.mubr.f32.gmra.mrb[0].mxu0 %v633
    %v635 = vpop.f32.mrb[0].mxu0
    %v636 = vadd.f32 %v546, %v635
    %v637 = vpop.f32.mrb[0].mxu0
    %638 = vmatprep.mubr.f32.mxu0 0.0
    %v639 = vand.u32 %v74, 4294901760
    %640 = vmatmul.mubr.f32.gmra.mrb[0].mxu0 %v639
    %v641 = vpop.f32.mrb[0].mxu0
    %v642 = vadd.f32 %v552, %v641
    %v643 = vpop.f32.mrb[0].mxu0
    %644 = vmatprep.mubr.f32.mxu0 0.0
    %v645 = vand.u32 %v77, 4294901760
    %646 = vmatmul.mubr.f32.gmra.mrb[0].mxu0 %v645
    %v647 = vpop.f32.mrb[0].mxu0
    %v648 = vadd.f32 %v558, %v647
    %v649 = vpop.f32.mrb[0].mxu0
    %650 = vmatprep.mubr.f32.mxu0 0.0
    %v651 = vand.u32 %v80, 4294901760
    %652 = vmatmul.mubr.f32.gmra.mrb[0].mxu0 %v651
    %v653 = vpop.f32.mrb[0].mxu0
    %v654 = vadd.f32 %v564, %v653
    %v655 = vpop.f32.mrb[0].mxu0
    %656 = vdwg.mxu0
    %v657 = vmax.f32 %v636, 0.0
    %v658 = vmax.f32 %v642, 0.0
    %v659 = vmax.f32 %v648, 0.0
    %v660 = vmax.f32 %v654, 0.0
    %662 = vset.pattern.permute.xlu0 0
    %663 = vperm.xlu0 %662, %v41
    %v664 = vpop.permute.xlu0 %663
    %667 = vset.pattern.permute.xlu0 0
    %668 = vperm.xlu0 %667, %v42
    %v669 = vpop.permute.xlu0 %668
    %672 = vset.pattern.permute.xlu0 0
    %673 = vperm.xlu0 %672, %v43
    %v674 = vpop.permute.xlu0 %673
    %677 = vset.pattern.permute.xlu0 0
    %678 = vperm.xlu0 %677, %v44
    %v679 = vpop.permute.xlu0 %678
    %vm681 = vcmask 261120
    %v683 = vsel %vm681, %v36, 0
    %v686 = vsel %vm681, %v37, 0
    %v689 = vsel %vm681, %v38, 0
    %v692 = vsel %vm681, %v39, 0
    %694 = vmatprep.subr.mxu0 0.0
    %v695 = vand.u32 %v657, 4294901760
    %696 = vmatpush1.msra.mxu0 %v695
    %697 = vmatprep.subr.mxu0 0.0
    %v698 = vand.u32 %v658, 4294901760
    %699 = vmatpush1.msra.mxu0 %v698
    %700 = vmatprep.subr.mxu0 0.0
    %v701 = vand.u32 %v659, 4294901760
    %702 = vmatpush1.msra.mxu0 %v701
    %703 = vmatprep.subr.mxu0 0.0
    %v704 = vand.u32 %v660, 4294901760
    %705 = vmatpush1.msra.mxu0 %v704
    %706 = vmatprep.subr.mxu0 0.0
    %707 = vmatpush1.msra.mxu0 0.0
    %708 = vmatprep.subr.mxu0 0.0
    %709 = vmatpush1.msra.mxu0 0.0
    %710 = vmatprep.subr.mxu0 0.0
    %711 = vmatpush1.msra.mxu0 0.0
    %712 = vmatprep.subr.mxu0 0.0
    %713 = vmatpush1.msra.mxu0 0.0
    %714 = vmatprep.subr.mxu0 0.0
    %715 = vmatpush1.msra.mxu0 0.0
    %716 = vmatprep.subr.mxu0 0.0
    %717 = vmatpush1.msra.mxu0 0.0
    %718 = vmatprep.subr.mxu0 0.0
    %719 = vmatpush1.msra.mxu0 0.0
    %720 = vmatprep.subr.mxu0 0.0
    %721 = vmatpush1.msra.mxu0 0.0
    %722 = vmatprep.subr.mxu0 0.0
    %723 = vmatpush1.msra.mxu0 0.0
    %724 = vmatprep.subr.mxu0 0.0
    %725 = vmatpush1.msra.mxu0 0.0
    %726 = vmatprep.subr.mxu0 0.0
    %727 = vmatpush1.msra.mxu0 0.0
    %728 = vmatprep.subr.mxu0 0.0
    %729 = vmatpush1.msra.mxu0 0.0
    %730 = vmatprep.subr.mxu0 0.0
    %731 = vmatpush1.msra.mxu0 0.0
    %732 = vmatprep.subr.mxu0 0.0
    %733 = vmatpush1.msra.mxu0 0.0
    %734 = vmatprep.subr.mxu0 0.0
    %735 = vmatpush1.msra.mxu0 0.0
    %736 = vmatprep.subr.mxu0 0.0
    %737 = vmatpush1.msra.mxu0 0.0
    %738 = vmatprep.subr.mxu0 0.0
    %739 = vmatpush1.msra.mxu0 0.0
    %740 = vmatprep.subr.mxu0 0.0
    %741 = vmatpush1.msra.mxu0 0.0
    %742 = vmatprep.subr.mxu0 0.0
    %743 = vmatpush1.msra.mxu0 0.0
    %744 = vmatprep.subr.mxu0 0.0
    %745 = vmatpush1.msra.mxu0 0.0
    %746 = vmatprep.subr.mxu0 0.0
    %747 = vmatpush1.msra.mxu0 0.0
    %748 = vmatprep.subr.mxu0 0.0
    %749 = vmatpush1.msra.mxu0 0.0
    %750 = vmatprep.subr.mxu0 0.0
    %751 = vmatpush1.msra.mxu0 0.0
    %752 = vmatprep.subr.mxu0 0.0
    %753 = vmatpush1.msra.mxu0 0.0
    %754 = vmatprep.subr.mxu0 0.0
    %755 = vmatpush1.msra.mxu0 0.0
    %756 = vmatprep.subr.mxu0 0.0
    %757 = vmatpush1.msra.mxu0 0.0
    %758 = vmatprep.subr.mxu0 0.0
    %759 = vmatpush1.msra.mxu0 0.0
    %760 = vmatprep.subr.mxu0 0.0
    %761 = vmatpush1.msra.mxu0 0.0
    %762 = vmatprep.mubr.f32.mxu0 0.0
    %v763 = vand.u32 %v683, 4294901760
    %v764 = vsub.f32 %v683, %v763
    %v765 = vand.u32 %v764, 4294901760
    %v766 = vsub.f32 %v764, %v765
    %v767 = vand.u32 %v766, 4294901760
    %768 = vmatmul.mubr.f32.gmra.mrb[0].mxu0 %v767
    %v769 = vpop.f32.mrb[0].mxu0
    %v770 = vadd.f32 %v664, %v769
    %v771 = vpop.f32.mrb[0].mxu0
    %772 = vmatprep.mubr.f32.mxu0 0.0
    %v773 = vand.u32 %v686, 4294901760
    %v774 = vsub.f32 %v686, %v773
    %v775 = vand.u32 %v774, 4294901760
    %v776 = vsub.f32 %v774, %v775
    %v777 = vand.u32 %v776, 4294901760
    %778 = vmatmul.mubr.f32.gmra.mrb[0].mxu0 %v777
    %v779 = vpop.f32.mrb[0].mxu0
    %v780 = vadd.f32 %v669, %v779
    %v781 = vpop.f32.mrb[0].mxu0
    %782 = vmatprep.mubr.f32.mxu0 0.0
    %v783 = vand.u32 %v689, 4294901760
    %v784 = vsub.f32 %v689, %v783
    %v785 = vand.u32 %v784, 4294901760
    %v786 = vsub.f32 %v784, %v785
    %v787 = vand.u32 %v786, 4294901760
    %788 = vmatmul.mubr.f32.gmra.mrb[0].mxu0 %v787
    %v789 = vpop.f32.mrb[0].mxu0
    %v790 = vadd.f32 %v674, %v789
    %v791 = vpop.f32.mrb[0].mxu0
    %792 = vmatprep.mubr.f32.mxu0 0.0
    %v793 = vand.u32 %v692, 4294901760
    %v794 = vsub.f32 %v692, %v793
    %v795 = vand.u32 %v794, 4294901760
    %v796 = vsub.f32 %v794, %v795
    %v797 = vand.u32 %v796, 4294901760
    %798 = vmatmul.mubr.f32.gmra.mrb[0].mxu0 %v797
    %v799 = vpop.f32.mrb[0].mxu0
    %v800 = vadd.f32 %v679, %v799
    %v801 = vpop.f32.mrb[0].mxu0
    %802 = vdwg.mxu0
    %803 = vmatprep.subr.mxu0 0.0
    %v804 = vand.u32 %v657, 4294901760
    %v805 = vsub.f32 %v657, %v804
    %v806 = vand.u32 %v805, 4294901760
    %v807 = vsub.f32 %v805, %v806
    %v808 = vand.u32 %v807, 4294901760
    %809 = vmatpush1.msra.mxu0 %v808
    %810 = vmatprep.subr.mxu0 0.0
    %v811 = vand.u32 %v658, 4294901760
    %v812 = vsub.f32 %v658, %v811
    %v813 = vand.u32 %v812, 4294901760
    %v814 = vsub.f32 %v812, %v813
    %v815 = vand.u32 %v814, 4294901760
    %816 = vmatpush1.msra.mxu0 %v815
    %817 = vmatprep.subr.mxu0 0.0
    %v818 = vand.u32 %v659, 4294901760
    %v819 = vsub.f32 %v659, %v818
    %v820 = vand.u32 %v819, 4294901760
    %v821 = vsub.f32 %v819, %v820
    %v822 = vand.u32 %v821, 4294901760
    %823 = vmatpush1.msra.mxu0 %v822
    %824 = vmatprep.subr.mxu0 0.0
    %v825 = vand.u32 %v660, 4294901760
    %v826 = vsub.f32 %v660, %v825
    %v827 = vand.u32 %v826, 4294901760
    %v828 = vsub.f32 %v826, %v827
    %v829 = vand.u32 %v828, 4294901760
    %830 = vmatpush1.msra.mxu0 %v829
    %831 = vmatprep.subr.mxu0 0.0
    %832 = vmatpush1.msra.mxu0 0.0
    %833 = vmatprep.subr.mxu0 0.0
    %834 = vmatpush1.msra.mxu0 0.0
    %835 = vmatprep.subr.mxu0 0.0
    %836 = vmatpush1.msra.mxu0 0.0
    %837 = vmatprep.subr.mxu0 0.0
    %838 = vmatpush1.msra.mxu0 0.0
    %839 = vmatprep.subr.mxu0 0.0
    %840 = vmatpush1.msra.mxu0 0.0
    %841 = vmatprep.subr.mxu0 0.0
    %842 = vmatpush1.msra.mxu0 0.0
    %843 = vmatprep.subr.mxu0 0.0
    %844 = vmatpush1.msra.mxu0 0.0
    %845 = vmatprep.subr.mxu0 0.0
    %846 = vmatpush1.msra.mxu0 0.0
    %847 = vmatprep.subr.mxu0 0.0
    %848 = vmatpush1.msra.mxu0 0.0
    %849 = vmatprep.subr.mxu0 0.0
    %850 = vmatpush1.msra.mxu0 0.0
    %851 = vmatprep.subr.mxu0 0.0
    %852 = vmatpush1.msra.mxu0 0.0
    %853 = vmatprep.subr.mxu0 0.0
    %854 = vmatpush1.msra.mxu0 0.0
    %855 = vmatprep.subr.mxu0 0.0
    %856 = vmatpush1.msra.mxu0 0.0
    %857 = vmatprep.subr.mxu0 0.0
    %858 = vmatpush1.msra.mxu0 0.0
    %859 = vmatprep.subr.mxu0 0.0
    %860 = vmatpush1.msra.mxu0 0.0
    %861 = vmatprep.subr.mxu0 0.0
    %862 = vmatpush1.msra.mxu0 0.0
    %863 = vmatprep.subr.mxu0 0.0
    %864 = vmatpush1.msra.mxu0 0.0
    %865 = vmatprep.subr.mxu0 0.0
    %866 = vmatpush1.msra.mxu0 0.0
    %867 = vmatprep.subr.mxu0 0.0
    %868 = vmatpush1.msra.mxu0 0.0
    %869 = vmatprep.subr.mxu0 0.0
    %870 = vmatpush1.msra.mxu0 0.0
    %871 = vmatprep.subr.mxu0 0.0
    %872 = vmatpush1.msra.mxu0 0.0
    %873 = vmatprep.subr.mxu0 0.0
    %874 = vmatpush1.msra.mxu0 0.0
    %875 = vmatprep.subr.mxu0 0.0
    %876 = vmatpush1.msra.mxu0 0.0
    %877 = vmatprep.subr.mxu0 0.0
    %878 = vmatpush1.msra.mxu0 0.0
    %879 = vmatprep.subr.mxu0 0.0
    %880 = vmatpush1.msra.mxu0 0.0
    %881 = vmatprep.subr.mxu0 0.0
    %882 = vmatpush1.msra.mxu0 0.0
    %883 = vmatprep.subr.mxu0 0.0
    %884 = vmatpush1.msra.mxu0 0.0
    %885 = vmatprep.subr.mxu0 0.0
    %886 = vmatpush1.msra.mxu0 0.0
    %887 = vmatprep.mubr.f32.mxu0 0.0
    %v888 = vand.u32 %v683, 4294901760
    %889 = vmatmul.mubr.f32.gmra.mrb[0].mxu0 %v888
    %v890 = vpop.f32.mrb[0].mxu0
    %v891 = vadd.f32 %v770, %v890
    %v892 = vpop.f32.mrb[0].mxu0
    %893 = vmatprep.mubr.f32.mxu0 0.0
    %v894 = vand.u32 %v686, 4294901760
    %895 = vmatmul.mubr.f32.gmra.mrb[0].mxu0 %v894
    %v896 = vpop.f32.mrb[0].mxu0
    %v897 = vadd.f32 %v780, %v896
    %v898 = vpop.f32.mrb[0].mxu0
    %899 = vmatprep.mubr.f32.mxu0 0.0
    %v900 = vand.u32 %v689, 4294901760
    %901 = vmatmul.mubr.f32.gmra.mrb[0].mxu0 %v900
    %v902 = vpop.f32.mrb[0].mxu0
    %v903 = vadd.f32 %v790, %v902
    %v904 = vpop.f32.mrb[0].mxu0
    %905 = vmatprep.mubr.f32.mxu0 0.0
    %v906 = vand.u32 %v692, 4294901760
    %907 = vmatmul.mubr.f32.gmra.mrb[0].mxu0 %v906
    %v908 = vpop.f32.mrb[0].mxu0
    %v909 = vadd.f32 %v800, %v908
    %v910 = vpop.f32.mrb[0].mxu0
    %911 = vdwg.mxu0
    %912 = vmatprep.subr.mxu0 0.0
    %v913 = vand.u32 %v657, 4294901760
    %v914 = vsub.f32 %v657, %v913
    %915 = vmatpush1.msra.mxu0 %v914
    %916 = vmatprep.subr.mxu0 0.0
    %v917 = vand.u32 %v658, 4294901760
    %v918 = vsub.f32 %v658, %v917
    %919 = vmatpush1.msra.mxu0 %v918
    %920 = vmatprep.subr.mxu0 0.0
    %v921 = vand.u32 %v659, 4294901760
    %v922 = vsub.f32 %v659, %v921
    %923 = vmatpush1.msra.mxu0 %v922
    %924 = vmatprep.subr.mxu0 0.0
    %v925 = vand.u32 %v660, 4294901760
    %v926 = vsub.f32 %v660, %v925
    %927 = vmatpush1.msra.mxu0 %v926
    %928 = vmatprep.subr.mxu0 0.0
    %929 = vmatpush1.msra.mxu0 0.0
    %930 = vmatprep.subr.mxu0 0.0
    %931 = vmatpush1.msra.mxu0 0.0
    %932 = vmatprep.subr.mxu0 0.0
    %933 = vmatpush1.msra.mxu0 0.0
    %934 = vmatprep.subr.mxu0 0.0
    %935 = vmatpush1.msra.mxu0 0.0
    %936 = vmatprep.subr.mxu0 0.0
    %937 = vmatpush1.msra.mxu0 0.0
    %938 = vmatprep.subr.mxu0 0.0
    %939 = vmatpush1.msra.mxu0 0.0
    %940 = vmatprep.subr.mxu0 0.0
    %941 = vmatpush1.msra.mxu0 0.0
    %942 = vmatprep.subr.mxu0 0.0
    %943 = vmatpush1.msra.mxu0 0.0
    %944 = vmatprep.subr.mxu0 0.0
    %945 = vmatpush1.msra.mxu0 0.0
    %946 = vmatprep.subr.mxu0 0.0
    %947 = vmatpush1.msra.mxu0 0.0
    %948 = vmatprep.subr.mxu0 0.0
    %949 = vmatpush1.msra.mxu0 0.0
    %950 = vmatprep.subr.mxu0 0.0
    %951 = vmatpush1.msra.mxu0 0.0
    %952 = vmatprep.subr.mxu0 0.0
    %953 = vmatpush1.msra.mxu0 0.0
    %954 = vmatprep.subr.mxu0 0.0
    %955 = vmatpush1.msra.mxu0 0.0
    %956 = vmatprep.subr.mxu0 0.0
    %957 = vmatpush1.msra.mxu0 0.0
    %958 = vmatprep.subr.mxu0 0.0
    %959 = vmatpush1.msra.mxu0 0.0
    %960 = vmatprep.subr.mxu0 0.0
    %961 = vmatpush1.msra.mxu0 0.0
    %962 = vmatprep.subr.mxu0 0.0
    %963 = vmatpush1.msra.mxu0 0.0
    %964 = vmatprep.subr.mxu0 0.0
    %965 = vmatpush1.msra.mxu0 0.0
    %966 = vmatprep.subr.mxu0 0.0
    %967 = vmatpush1.msra.mxu0 0.0
    %968 = vmatprep.subr.mxu0 0.0
    %969 = vmatpush1.msra.mxu0 0.0
    %970 = vmatprep.subr.mxu0 0.0
    %971 = vmatpush1.msra.mxu0 0.0
    %972 = vmatprep.subr.mxu0 0.0
    %973 = vmatpush1.msra.mxu0 0.0
    %974 = vmatprep.subr.mxu0 0.0
    %975 = vmatpush1.msra.mxu0 0.0
    %976 = vmatprep.subr.mxu0 0.0
    %977 = vmatpush1.msra.mxu0 0.0
    %978 = vmatprep.subr.mxu0 0.0
    %979 = vmatpush1.msra.mxu0 0.0
    %980 = vmatprep.subr.mxu0 0.0
    %981 = vmatpush1.msra.mxu0 0.0
    %982 = vmatprep.subr.mxu0 0.0
    %983 = vmatpush1.msra.mxu0 0.0
    %984 = vmatprep.mubr.f32.mxu0 0.0
    %v985 = vand.u32 %v683, 4294901760
    %v986 = vsub.f32 %v683, %v985
    %987 = vmatmul.mubr.f32.gmra.mrb[0].mxu0 %v986
    %v988 = vpop.f32.mrb[0].mxu0
    %v989 = vadd.f32 %v891, %v988
    %v990 = vpop.f32.mrb[0].mxu0
    %991 = vmatprep.mubr.f32.mxu0 0.0
    %v992 = vand.u32 %v686, 4294901760
    %v993 = vsub.f32 %v686, %v992
    %994 = vmatmul.mubr.f32.gmra.mrb[0].mxu0 %v993
    %v995 = vpop.f32.mrb[0].mxu0
    %v996 = vadd.f32 %v897, %v995
    %v997 = vpop.f32.mrb[0].mxu0
    %998 = vmatprep.mubr.f32.mxu0 0.0
    %v999 = vand.u32 %v689, 4294901760
    %v1000 = vsub.f32 %v689, %v999
    %1001 = vmatmul.mubr.f32.gmra.mrb[0].mxu0 %v1000
    %v1002 = vpop.f32.mrb[0].mxu0
    %v1003 = vadd.f32 %v903, %v1002
    %v1004 = vpop.f32.mrb[0].mxu0
    %1005 = vmatprep.mubr.f32.mxu0 0.0
    %v1006 = vand.u32 %v692, 4294901760
    %v1007 = vsub.f32 %v692, %v1006
    %1008 = vmatmul.mubr.f32.gmra.mrb[0].mxu0 %v1007
    %v1009 = vpop.f32.mrb[0].mxu0
    %v1010 = vadd.f32 %v909, %v1009
    %v1011 = vpop.f32.mrb[0].mxu0
    %1012 = vdwg.mxu0
    %1013 = vmatprep.subr.mxu0 0.0
    %v1014 = vand.u32 %v657, 4294901760
    %1015 = vmatpush1.msra.mxu0 %v1014
    %1016 = vmatprep.subr.mxu0 0.0
    %v1017 = vand.u32 %v658, 4294901760
    %1018 = vmatpush1.msra.mxu0 %v1017
    %1019 = vmatprep.subr.mxu0 0.0
    %v1020 = vand.u32 %v659, 4294901760
    %1021 = vmatpush1.msra.mxu0 %v1020
    %1022 = vmatprep.subr.mxu0 0.0
    %v1023 = vand.u32 %v660, 4294901760
    %1024 = vmatpush1.msra.mxu0 %v1023
    %1025 = vmatprep.subr.mxu0 0.0
    %1026 = vmatpush1.msra.mxu0 0.0
    %1027 = vmatprep.subr.mxu0 0.0
    %1028 = vmatpush1.msra.mxu0 0.0
    %1029 = vmatprep.subr.mxu0 0.0
    %1030 = vmatpush1.msra.mxu0 0.0
    %1031 = vmatprep.subr.mxu0 0.0
    %1032 = vmatpush1.msra.mxu0 0.0
    %1033 = vmatprep.subr.mxu0 0.0
    %1034 = vmatpush1.msra.mxu0 0.0
    %1035 = vmatprep.subr.mxu0 0.0
    %1036 = vmatpush1.msra.mxu0 0.0
    %1037 = vmatprep.subr.mxu0 0.0
    %1038 = vmatpush1.msra.mxu0 0.0
    %1039 = vmatprep.subr.mxu0 0.0
    %1040 = vmatpush1.msra.mxu0 0.0
    %1041 = vmatprep.subr.mxu0 0.0
    %1042 = vmatpush1.msra.mxu0 0.0
    %1043 = vmatprep.subr.mxu0 0.0
    %1044 = vmatpush1.msra.mxu0 0.0
    %1045 = vmatprep.subr.mxu0 0.0
    %1046 = vmatpush1.msra.mxu0 0.0
    %1047 = vmatprep.subr.mxu0 0.0
    %1048 = vmatpush1.msra.mxu0 0.0
    %1049 = vmatprep.subr.mxu0 0.0
    %1050 = vmatpush1.msra.mxu0 0.0
    %1051 = vmatprep.subr.mxu0 0.0
    %1052 = vmatpush1.msra.mxu0 0.0
    %1053 = vmatprep.subr.mxu0 0.0
    %1054 = vmatpush1.msra.mxu0 0.0
    %1055 = vmatprep.subr.mxu0 0.0
    %1056 = vmatpush1.msra.mxu0 0.0
    %1057 = vmatprep.subr.mxu0 0.0
    %1058 = vmatpush1.msra.mxu0 0.0
    %1059 = vmatprep.subr.mxu0 0.0
    %1060 = vmatpush1.msra.mxu0 0.0
    %1061 = vmatprep.subr.mxu0 0.0
    %1062 = vmatpush1.msra.mxu0 0.0
    %1063 = vmatprep.subr.mxu0 0.0
    %1064 = vmatpush1.msra.mxu0 0.0
    %1065 = vmatprep.subr.mxu0 0.0
    %1066 = vmatpush1.msra.mxu0 0.0
    %1067 = vmatprep.subr.mxu0 0.0
    %1068 = vmatpush1.msra.mxu0 0.0
    %1069 = vmatprep.subr.mxu0 0.0
    %1070 = vmatpush1.msra.mxu0 0.0
    %1071 = vmatprep.subr.mxu0 0.0
    %1072 = vmatpush1.msra.mxu0 0.0
    %1073 = vmatprep.subr.mxu0 0.0
    %1074 = vmatpush1.msra.mxu0 0.0
    %1075 = vmatprep.subr.mxu0 0.0
    %1076 = vmatpush1.msra.mxu0 0.0
    %1077 = vmatprep.subr.mxu0 0.0
    %1078 = vmatpush1.msra.mxu0 0.0
    %1079 = vmatprep.subr.mxu0 0.0
    %1080 = vmatpush1.msra.mxu0 0.0
    %1081 = vmatprep.mubr.f32.mxu0 0.0
    %v1082 = vand.u32 %v683, 4294901760
    %v1083 = vsub.f32 %v683, %v1082
    %v1084 = vand.u32 %v1083, 4294901760
    %1085 = vmatmul.mubr.f32.gmra.mrb[0].mxu0 %v1084
    %v1086 = vpop.f32.mrb[0].mxu0
    %v1087 = vadd.f32 %v989, %v1086
    %v1088 = vpop.f32.mrb[0].mxu0
    %1089 = vmatprep.mubr.f32.mxu0 0.0
    %v1090 = vand.u32 %v686, 4294901760
    %v1091 = vsub.f32 %v686, %v1090
    %v1092 = vand.u32 %v1091, 4294901760
    %1093 = vmatmul.mubr.f32.gmra.mrb[0].mxu0 %v1092
    %v1094 = vpop.f32.mrb[0].mxu0
    %v1095 = vadd.f32 %v996, %v1094
    %v1096 = vpop.f32.mrb[0].mxu0
    %1097 = vmatprep.mubr.f32.mxu0 0.0
    %v1098 = vand.u32 %v689, 4294901760
    %v1099 = vsub.f32 %v689, %v1098
    %v1100 = vand.u32 %v1099, 4294901760
    %1101 = vmatmul.mubr.f32.gmra.mrb[0].mxu0 %v1100
    %v1102 = vpop.f32.mrb[0].mxu0
    %v1103 = vadd.f32 %v1003, %v1102
    %v1104 = vpop.f32.mrb[0].mxu0
    %1105 = vmatprep.mubr.f32.mxu0 0.0
    %v1106 = vand.u32 %v692, 4294901760
    %v1107 = vsub.f32 %v692, %v1106
    %v1108 = vand.u32 %v1107, 4294901760
    %1109 = vmatmul.mubr.f32.gmra.mrb[0].mxu0 %v1108
    %v1110 = vpop.f32.mrb[0].mxu0
    %v1111 = vadd.f32 %v1010, %v1110
    %v1112 = vpop.f32.mrb[0].mxu0
    %1113 = vdwg.mxu0
    %1114 = vmatprep.subr.mxu0 0.0
    %v1115 = vand.u32 %v657, 4294901760
    %v1116 = vsub.f32 %v657, %v1115
    %v1117 = vand.u32 %v1116, 4294901760
    %1118 = vmatpush1.msra.mxu0 %v1117
    %1119 = vmatprep.subr.mxu0 0.0
    %v1120 = vand.u32 %v658, 4294901760
    %v1121 = vsub.f32 %v658, %v1120
    %v1122 = vand.u32 %v1121, 4294901760
    %1123 = vmatpush1.msra.mxu0 %v1122
    %1124 = vmatprep.subr.mxu0 0.0
    %v1125 = vand.u32 %v659, 4294901760
    %v1126 = vsub.f32 %v659, %v1125
    %v1127 = vand.u32 %v1126, 4294901760
    %1128 = vmatpush1.msra.mxu0 %v1127
    %1129 = vmatprep.subr.mxu0 0.0
    %v1130 = vand.u32 %v660, 4294901760
    %v1131 = vsub.f32 %v660, %v1130
    %v1132 = vand.u32 %v1131, 4294901760
    %1133 = vmatpush1.msra.mxu0 %v1132
    %1134 = vmatprep.subr.mxu0 0.0
    %1135 = vmatpush1.msra.mxu0 0.0
    %1136 = vmatprep.subr.mxu0 0.0
    %1137 = vmatpush1.msra.mxu0 0.0
    %1138 = vmatprep.subr.mxu0 0.0
    %1139 = vmatpush1.msra.mxu0 0.0
    %1140 = vmatprep.subr.mxu0 0.0
    %1141 = vmatpush1.msra.mxu0 0.0
    %1142 = vmatprep.subr.mxu0 0.0
    %1143 = vmatpush1.msra.mxu0 0.0
    %1144 = vmatprep.subr.mxu0 0.0
    %1145 = vmatpush1.msra.mxu0 0.0
    %1146 = vmatprep.subr.mxu0 0.0
    %1147 = vmatpush1.msra.mxu0 0.0
    %1148 = vmatprep.subr.mxu0 0.0
    %1149 = vmatpush1.msra.mxu0 0.0
    %1150 = vmatprep.subr.mxu0 0.0
    %1151 = vmatpush1.msra.mxu0 0.0
    %1152 = vmatprep.subr.mxu0 0.0
    %1153 = vmatpush1.msra.mxu0 0.0
    %1154 = vmatprep.subr.mxu0 0.0
    %1155 = vmatpush1.msra.mxu0 0.0
    %1156 = vmatprep.subr.mxu0 0.0
    %1157 = vmatpush1.msra.mxu0 0.0
    %1158 = vmatprep.subr.mxu0 0.0
    %1159 = vmatpush1.msra.mxu0 0.0
    %1160 = vmatprep.subr.mxu0 0.0
    %1161 = vmatpush1.msra.mxu0 0.0
    %1162 = vmatprep.subr.mxu0 0.0
    %1163 = vmatpush1.msra.mxu0 0.0
    %1164 = vmatprep.subr.mxu0 0.0
    %1165 = vmatpush1.msra.mxu0 0.0
    %1166 = vmatprep.subr.mxu0 0.0
    %1167 = vmatpush1.msra.mxu0 0.0
    %1168 = vmatprep.subr.mxu0 0.0
    %1169 = vmatpush1.msra.mxu0 0.0
    %1170 = vmatprep.subr.mxu0 0.0
    %1171 = vmatpush1.msra.mxu0 0.0
    %1172 = vmatprep.subr.mxu0 0.0
    %1173 = vmatpush1.msra.mxu0 0.0
    %1174 = vmatprep.subr.mxu0 0.0
    %1175 = vmatpush1.msra.mxu0 0.0
    %1176 = vmatprep.subr.mxu0 0.0
    %1177 = vmatpush1.msra.mxu0 0.0
    %1178 = vmatprep.subr.mxu0 0.0
    %1179 = vmatpush1.msra.mxu0 0.0
    %1180 = vmatprep.subr.mxu0 0.0
    %1181 = vmatpush1.msra.mxu0 0.0
    %1182 = vmatprep.subr.mxu0 0.0
    %1183 = vmatpush1.msra.mxu0 0.0
    %1184 = vmatprep.subr.mxu0 0.0
    %1185 = vmatpush1.msra.mxu0 0.0
    %1186 = vmatprep.subr.mxu0 0.0
    %1187 = vmatpush1.msra.mxu0 0.0
    %1188 = vmatprep.subr.mxu0 0.0
    %1189 = vmatpush1.msra.mxu0 0.0
    %1190 = vmatprep.mubr.f32.mxu0 0.0
    %v1191 = vand.u32 %v683, 4294901760
    %1192 = vmatmul.mubr.f32.gmra.mrb[0].mxu0 %v1191
    %v1193 = vpop.f32.mrb[0].mxu0
    %v1194 = vadd.f32 %v1087, %v1193
    %v1195 = vpop.f32.mrb[0].mxu0
    %1196 = vmatprep.mubr.f32.mxu0 0.0
    %v1197 = vand.u32 %v686, 4294901760
    %1198 = vmatmul.mubr.f32.gmra.mrb[0].mxu0 %v1197
    %v1199 = vpop.f32.mrb[0].mxu0
    %v1200 = vadd.f32 %v1095, %v1199
    %v1201 = vpop.f32.mrb[0].mxu0
    %1202 = vmatprep.mubr.f32.mxu0 0.0
    %v1203 = vand.u32 %v689, 4294901760
    %1204 = vmatmul.mubr.f32.gmra.mrb[0].mxu0 %v1203
    %v1205 = vpop.f32.mrb[0].mxu0
    %v1206 = vadd.f32 %v1103, %v1205
    %v1207 = vpop.f32.mrb[0].mxu0
    %1208 = vmatprep.mubr.f32.mxu0 0.0
    %v1209 = vand.u32 %v692, 4294901760
    %1210 = vmatmul.mubr.f32.gmra.mrb[0].mxu0 %v1209
    %v1211 = vpop.f32.mrb[0].mxu0
    %v1212 = vadd.f32 %v1111, %v1211
    %v1213 = vpop.f32.mrb[0].mxu0
    %1214 = vdwg.mxu0
    %1215 = vmatprep.subr.mxu0 0.0
    %v1216 = vand.u32 %v657, 4294901760
    %1217 = vmatpush1.msra.mxu0 %v1216
    %1218 = vmatprep.subr.mxu0 0.0
    %v1219 = vand.u32 %v658, 4294901760
    %1220 = vmatpush1.msra.mxu0 %v1219
    %1221 = vmatprep.subr.mxu0 0.0
    %v1222 = vand.u32 %v659, 4294901760
    %1223 = vmatpush1.msra.mxu0 %v1222
    %1224 = vmatprep.subr.mxu0 0.0
    %v1225 = vand.u32 %v660, 4294901760
    %1226 = vmatpush1.msra.mxu0 %v1225
    %1227 = vmatprep.subr.mxu0 0.0
    %1228 = vmatpush1.msra.mxu0 0.0
    %1229 = vmatprep.subr.mxu0 0.0
    %1230 = vmatpush1.msra.mxu0 0.0
    %1231 = vmatprep.subr.mxu0 0.0
    %1232 = vmatpush1.msra.mxu0 0.0
    %1233 = vmatprep.subr.mxu0 0.0
    %1234 = vmatpush1.msra.mxu0 0.0
    %1235 = vmatprep.subr.mxu0 0.0
    %1236 = vmatpush1.msra.mxu0 0.0
    %1237 = vmatprep.subr.mxu0 0.0
    %1238 = vmatpush1.msra.mxu0 0.0
    %1239 = vmatprep.subr.mxu0 0.0
    %1240 = vmatpush1.msra.mxu0 0.0
    %1241 = vmatprep.subr.mxu0 0.0
    %1242 = vmatpush1.msra.mxu0 0.0
    %1243 = vmatprep.subr.mxu0 0.0
    %1244 = vmatpush1.msra.mxu0 0.0
    %1245 = vmatprep.subr.mxu0 0.0
    %1246 = vmatpush1.msra.mxu0 0.0
    %1247 = vmatprep.subr.mxu0 0.0
    %1248 = vmatpush1.msra.mxu0 0.0
    %1249 = vmatprep.subr.mxu0 0.0
    %1250 = vmatpush1.msra.mxu0 0.0
    %1251 = vmatprep.subr.mxu0 0.0
    %1252 = vmatpush1.msra.mxu0 0.0
    %1253 = vmatprep.subr.mxu0 0.0
    %1254 = vmatpush1.msra.mxu0 0.0
    %1255 = vmatprep.subr.mxu0 0.0
    %1256 = vmatpush1.msra.mxu0 0.0
    %1257 = vmatprep.subr.mxu0 0.0
    %1258 = vmatpush1.msra.mxu0 0.0
    %1259 = vmatprep.subr.mxu0 0.0
    %1260 = vmatpush1.msra.mxu0 0.0
    %1261 = vmatprep.subr.mxu0 0.0
    %1262 = vmatpush1.msra.mxu0 0.0
    %1263 = vmatprep.subr.mxu0 0.0
    %1264 = vmatpush1.msra.mxu0 0.0
    %1265 = vmatprep.subr.mxu0 0.0
    %1266 = vmatpush1.msra.mxu0 0.0
    %1267 = vmatprep.subr.mxu0 0.0
    %1268 = vmatpush1.msra.mxu0 0.0
    %1269 = vmatprep.subr.mxu0 0.0
    %1270 = vmatpush1.msra.mxu0 0.0
    %1271 = vmatprep.subr.mxu0 0.0
    %1272 = vmatpush1.msra.mxu0 0.0
    %1273 = vmatprep.subr.mxu0 0.0
    %1274 = vmatpush1.msra.mxu0 0.0
    %1275 = vmatprep.subr.mxu0 0.0
    %1276 = vmatpush1.msra.mxu0 0.0
    %1277 = vmatprep.subr.mxu0 0.0
    %1278 = vmatpush1.msra.mxu0 0.0
    %1279 = vmatprep.subr.mxu0 0.0
    %1280 = vmatpush1.msra.mxu0 0.0
    %1281 = vmatprep.subr.mxu0 0.0
    %1282 = vmatpush1.msra.mxu0 0.0
    %1283 = vmatprep.mubr.f32.mxu0 0.0
    %v1284 = vand.u32 %v683, 4294901760
    %1285 = vmatmul.mubr.f32.gmra.mrb[0].mxu0 %v1284
    %v1286 = vpop.f32.mrb[0].mxu0
    %v1287 = vadd.f32 %v1194, %v1286
    %v1288 = vpop.f32.mrb[0].mxu0
    %1289 = vmatprep.mubr.f32.mxu0 0.0
    %v1290 = vand.u32 %v686, 4294901760
    %1291 = vmatmul.mubr.f32.gmra.mrb[0].mxu0 %v1290
    %v1292 = vpop.f32.mrb[0].mxu0
    %v1293 = vadd.f32 %v1200, %v1292
    %v1294 = vpop.f32.mrb[0].mxu0
    %1295 = vmatprep.mubr.f32.mxu0 0.0
    %v1296 = vand.u32 %v689, 4294901760
    %1297 = vmatmul.mubr.f32.gmra.mrb[0].mxu0 %v1296
    %v1298 = vpop.f32.mrb[0].mxu0
    %v1299 = vadd.f32 %v1206, %v1298
    %v1300 = vpop.f32.mrb[0].mxu0
    %1301 = vmatprep.mubr.f32.mxu0 0.0
    %v1302 = vand.u32 %v692, 4294901760
    %1303 = vmatmul.mubr.f32.gmra.mrb[0].mxu0 %v1302
    %v1304 = vpop.f32.mrb[0].mxu0
    %v1305 = vadd.f32 %v1212, %v1304
    %v1306 = vpop.f32.mrb[0].mxu0
    %1307 = vdwg.mxu0
    %v1308 = vmax.f32 %v1287, 0.0
    %v1309 = vmax.f32 %v1293, 0.0
    %v1310 = vmax.f32 %v1299, 0.0
    %v1311 = vmax.f32 %v1305, 0.0
    %1313 = vset.pattern.permute.xlu0 0
    %1314 = vperm.xlu0 %1313, %v48
    %v1315 = vpop.permute.xlu0 %1314
    %v1318 = vsel %vm681, %v46, 0
    %1320 = vmatprep.subr.mxu0 0.0
    %v1321 = vand.u32 %v1308, 4294901760
    %1322 = vmatpush1.msra.mxu0 %v1321
    %1323 = vmatprep.subr.mxu0 0.0
    %v1324 = vand.u32 %v1309, 4294901760
    %1325 = vmatpush1.msra.mxu0 %v1324
    %1326 = vmatprep.subr.mxu0 0.0
    %v1327 = vand.u32 %v1310, 4294901760
    %1328 = vmatpush1.msra.mxu0 %v1327
    %1329 = vmatprep.subr.mxu0 0.0
    %v1330 = vand.u32 %v1311, 4294901760
    %1331 = vmatpush1.msra.mxu0 %v1330
    %1332 = vmatprep.subr.mxu0 0.0
    %1333 = vmatpush1.msra.mxu0 0.0
    %1334 = vmatprep.subr.mxu0 0.0
    %1335 = vmatpush1.msra.mxu0 0.0
    %1336 = vmatprep.subr.mxu0 0.0
    %1337 = vmatpush1.msra.mxu0 0.0
    %1338 = vmatprep.subr.mxu0 0.0
    %1339 = vmatpush1.msra.mxu0 0.0
    %1340 = vmatprep.subr.mxu0 0.0
    %1341 = vmatpush1.msra.mxu0 0.0
    %1342 = vmatprep.subr.mxu0 0.0
    %1343 = vmatpush1.msra.mxu0 0.0
    %1344 = vmatprep.subr.mxu0 0.0
    %1345 = vmatpush1.msra.mxu0 0.0
    %1346 = vmatprep.subr.mxu0 0.0
    %1347 = vmatpush1.msra.mxu0 0.0
    %1348 = vmatprep.subr.mxu0 0.0
    %1349 = vmatpush1.msra.mxu0 0.0
    %1350 = vmatprep.subr.mxu0 0.0
    %1351 = vmatpush1.msra.mxu0 0.0
    %1352 = vmatprep.subr.mxu0 0.0
    %1353 = vmatpush1.msra.mxu0 0.0
    %1354 = vmatprep.subr.mxu0 0.0
    %1355 = vmatpush1.msra.mxu0 0.0
    %1356 = vmatprep.subr.mxu0 0.0
    %1357 = vmatpush1.msra.mxu0 0.0
    %1358 = vmatprep.subr.mxu0 0.0
    %1359 = vmatpush1.msra.mxu0 0.0
    %1360 = vmatprep.subr.mxu0 0.0
    %1361 = vmatpush1.msra.mxu0 0.0
    %1362 = vmatprep.subr.mxu0 0.0
    %1363 = vmatpush1.msra.mxu0 0.0
    %1364 = vmatprep.subr.mxu0 0.0
    %1365 = vmatpush1.msra.mxu0 0.0
    %1366 = vmatprep.subr.mxu0 0.0
    %1367 = vmatpush1.msra.mxu0 0.0
    %1368 = vmatprep.subr.mxu0 0.0
    %1369 = vmatpush1.msra.mxu0 0.0
    %1370 = vmatprep.subr.mxu0 0.0
    %1371 = vmatpush1.msra.mxu0 0.0
    %1372 = vmatprep.subr.mxu0 0.0
    %1373 = vmatpush1.msra.mxu0 0.0
    %1374 = vmatprep.subr.mxu0 0.0
    %1375 = vmatpush1.msra.mxu0 0.0
    %1376 = vmatprep.subr.mxu0 0.0
    %1377 = vmatpush1.msra.mxu0 0.0
    %1378 = vmatprep.subr.mxu0 0.0
    %1379 = vmatpush1.msra.mxu0 0.0
    %1380 = vmatprep.subr.mxu0 0.0
    %1381 = vmatpush1.msra.mxu0 0.0
    %1382 = vmatprep.subr.mxu0 0.0
    %1383 = vmatpush1.msra.mxu0 0.0
    %1384 = vmatprep.subr.mxu0 0.0
    %1385 = vmatpush1.msra.mxu0 0.0
    %1386 = vmatprep.subr.mxu0 0.0
    %1387 = vmatpush1.msra.mxu0 0.0
    %1388 = vmatprep.mubr.f32.mxu0 0.0
    %v1389 = vand.u32 %v1318, 4294901760
    %v1390 = vsub.f32 %v1318, %v1389
    %v1391 = vand.u32 %v1390, 4294901760
    %v1392 = vsub.f32 %v1390, %v1391
    %v1393 = vand.u32 %v1392, 4294901760
    %1394 = vmatmul.mubr.f32.gmra.mrb[0].mxu0 %v1393
    %v1395 = vpop.f32.mrb[0].mxu0
    %v1396 = vadd.f32 %v1315, %v1395
    %v1397 = vpop.f32.mrb[0].mxu0
    %1398 = vdwg.mxu0
    %1399 = vmatprep.subr.mxu0 0.0
    %v1400 = vand.u32 %v1308, 4294901760
    %v1401 = vsub.f32 %v1308, %v1400
    %v1402 = vand.u32 %v1401, 4294901760
    %v1403 = vsub.f32 %v1401, %v1402
    %v1404 = vand.u32 %v1403, 4294901760
    %1405 = vmatpush1.msra.mxu0 %v1404
    %1406 = vmatprep.subr.mxu0 0.0
    %v1407 = vand.u32 %v1309, 4294901760
    %v1408 = vsub.f32 %v1309, %v1407
    %v1409 = vand.u32 %v1408, 4294901760
    %v1410 = vsub.f32 %v1408, %v1409
    %v1411 = vand.u32 %v1410, 4294901760
    %1412 = vmatpush1.msra.mxu0 %v1411
    %1413 = vmatprep.subr.mxu0 0.0
    %v1414 = vand.u32 %v1310, 4294901760
    %v1415 = vsub.f32 %v1310, %v1414
    %v1416 = vand.u32 %v1415, 4294901760
    %v1417 = vsub.f32 %v1415, %v1416
    %v1418 = vand.u32 %v1417, 4294901760
    %1419 = vmatpush1.msra.mxu0 %v1418
    %1420 = vmatprep.subr.mxu0 0.0
    %v1421 = vand.u32 %v1311, 4294901760
    %v1422 = vsub.f32 %v1311, %v1421
    %v1423 = vand.u32 %v1422, 4294901760
    %v1424 = vsub.f32 %v1422, %v1423
    %v1425 = vand.u32 %v1424, 4294901760
    %1426 = vmatpush1.msra.mxu0 %v1425
    %1427 = vmatprep.subr.mxu0 0.0
    %1428 = vmatpush1.msra.mxu0 0.0
    %1429 = vmatprep.subr.mxu0 0.0
    %1430 = vmatpush1.msra.mxu0 0.0
    %1431 = vmatprep.subr.mxu0 0.0
    %1432 = vmatpush1.msra.mxu0 0.0
    %1433 = vmatprep.subr.mxu0 0.0
    %1434 = vmatpush1.msra.mxu0 0.0
    %1435 = vmatprep.subr.mxu0 0.0
    %1436 = vmatpush1.msra.mxu0 0.0
    %1437 = vmatprep.subr.mxu0 0.0
    %1438 = vmatpush1.msra.mxu0 0.0
    %1439 = vmatprep.subr.mxu0 0.0
    %1440 = vmatpush1.msra.mxu0 0.0
    %1441 = vmatprep.subr.mxu0 0.0
    %1442 = vmatpush1.msra.mxu0 0.0
    %1443 = vmatprep.subr.mxu0 0.0
    %1444 = vmatpush1.msra.mxu0 0.0
    %1445 = vmatprep.subr.mxu0 0.0
    %1446 = vmatpush1.msra.mxu0 0.0
    %1447 = vmatprep.subr.mxu0 0.0
    %1448 = vmatpush1.msra.mxu0 0.0
    %1449 = vmatprep.subr.mxu0 0.0
    %1450 = vmatpush1.msra.mxu0 0.0
    %1451 = vmatprep.subr.mxu0 0.0
    %1452 = vmatpush1.msra.mxu0 0.0
    %1453 = vmatprep.subr.mxu0 0.0
    %1454 = vmatpush1.msra.mxu0 0.0
    %1455 = vmatprep.subr.mxu0 0.0
    %1456 = vmatpush1.msra.mxu0 0.0
    %1457 = vmatprep.subr.mxu0 0.0
    %1458 = vmatpush1.msra.mxu0 0.0
    %1459 = vmatprep.subr.mxu0 0.0
    %1460 = vmatpush1.msra.mxu0 0.0
    %1461 = vmatprep.subr.mxu0 0.0
    %1462 = vmatpush1.msra.mxu0 0.0
    %1463 = vmatprep.subr.mxu0 0.0
    %1464 = vmatpush1.msra.mxu0 0.0
    %1465 = vmatprep.subr.mxu0 0.0
    %1466 = vmatpush1.msra.mxu0 0.0
    %1467 = vmatprep.subr.mxu0 0.0
    %1468 = vmatpush1.msra.mxu0 0.0
    %1469 = vmatprep.subr.mxu0 0.0
    %1470 = vmatpush1.msra.mxu0 0.0
    %1471 = vmatprep.subr.mxu0 0.0
    %1472 = vmatpush1.msra.mxu0 0.0
    %1473 = vmatprep.subr.mxu0 0.0
    %1474 = vmatpush1.msra.mxu0 0.0
    %1475 = vmatprep.subr.mxu0 0.0
    %1476 = vmatpush1.msra.mxu0 0.0
    %1477 = vmatprep.subr.mxu0 0.0
    %1478 = vmatpush1.msra.mxu0 0.0
    %1479 = vmatprep.subr.mxu0 0.0
    %1480 = vmatpush1.msra.mxu0 0.0
    %1481 = vmatprep.subr.mxu0 0.0
    %1482 = vmatpush1.msra.mxu0 0.0
    %1483 = vmatprep.mubr.f32.mxu0 0.0
    %v1484 = vand.u32 %v1318, 4294901760
    %1485 = vmatmul.mubr.f32.gmra.mrb[0].mxu0 %v1484
    %v1486 = vpop.f32.mrb[0].mxu0
    %v1487 = vadd.f32 %v1396, %v1486
    %v1488 = vpop.f32.mrb[0].mxu0
    %1489 = vdwg.mxu0
    %1490 = vmatprep.subr.mxu0 0.0
    %v1491 = vand.u32 %v1308, 4294901760
    %v1492 = vsub.f32 %v1308, %v1491
    %1493 = vmatpush1.msra.mxu0 %v1492
    %1494 = vmatprep.subr.mxu0 0.0
    %v1495 = vand.u32 %v1309, 4294901760
    %v1496 = vsub.f32 %v1309, %v1495
    %1497 = vmatpush1.msra.mxu0 %v1496
    %1498 = vmatprep.subr.mxu0 0.0
    %v1499 = vand.u32 %v1310, 4294901760
    %v1500 = vsub.f32 %v1310, %v1499
    %1501 = vmatpush1.msra.mxu0 %v1500
    %1502 = vmatprep.subr.mxu0 0.0
    %v1503 = vand.u32 %v1311, 4294901760
    %v1504 = vsub.f32 %v1311, %v1503
    %1505 = vmatpush1.msra.mxu0 %v1504
    %1506 = vmatprep.subr.mxu0 0.0
    %1507 = vmatpush1.msra.mxu0 0.0
    %1508 = vmatprep.subr.mxu0 0.0
    %1509 = vmatpush1.msra.mxu0 0.0
    %1510 = vmatprep.subr.mxu0 0.0
    %1511 = vmatpush1.msra.mxu0 0.0
    %1512 = vmatprep.subr.mxu0 0.0
    %1513 = vmatpush1.msra.mxu0 0.0
    %1514 = vmatprep.subr.mxu0 0.0
    %1515 = vmatpush1.msra.mxu0 0.0
    %1516 = vmatprep.subr.mxu0 0.0
    %1517 = vmatpush1.msra.mxu0 0.0
    %1518 = vmatprep.subr.mxu0 0.0
    %1519 = vmatpush1.msra.mxu0 0.0
    %1520 = vmatprep.subr.mxu0 0.0
    %1521 = vmatpush1.msra.mxu0 0.0
    %1522 = vmatprep.subr.mxu0 0.0
    %1523 = vmatpush1.msra.mxu0 0.0
    %1524 = vmatprep.subr.mxu0 0.0
    %1525 = vmatpush1.msra.mxu0 0.0
    %1526 = vmatprep.subr.mxu0 0.0
    %1527 = vmatpush1.msra.mxu0 0.0
    %1528 = vmatprep.subr.mxu0 0.0
    %1529 = vmatpush1.msra.mxu0 0.0
    %1530 = vmatprep.subr.mxu0 0.0
    %1531 = vmatpush1.msra.mxu0 0.0
    %1532 = vmatprep.subr.mxu0 0.0
    %1533 = vmatpush1.msra.mxu0 0.0
    %1534 = vmatprep.subr.mxu0 0.0
    %1535 = vmatpush1.msra.mxu0 0.0
    %1536 = vmatprep.subr.mxu0 0.0
    %1537 = vmatpush1.msra.mxu0 0.0
    %1538 = vmatprep.subr.mxu0 0.0
    %1539 = vmatpush1.msra.mxu0 0.0
    %1540 = vmatprep.subr.mxu0 0.0
    %1541 = vmatpush1.msra.mxu0 0.0
    %1542 = vmatprep.subr.mxu0 0.0
    %1543 = vmatpush1.msra.mxu0 0.0
    %1544 = vmatprep.subr.mxu0 0.0
    %1545 = vmatpush1.msra.mxu0 0.0
    %1546 = vmatprep.subr.mxu0 0.0
    %1547 = vmatpush1.msra.mxu0 0.0
    %1548 = vmatprep.subr.mxu0 0.0
    %1549 = vmatpush1.msra.mxu0 0.0
    %1550 = vmatprep.subr.mxu0 0.0
    %1551 = vmatpush1.msra.mxu0 0.0
    %1552 = vmatprep.subr.mxu0 0.0
    %1553 = vmatpush1.msra.mxu0 0.0
    %1554 = vmatprep.subr.mxu0 0.0
    %1555 = vmatpush1.msra.mxu0 0.0
    %1556 = vmatprep.subr.mxu0 0.0
    %1557 = vmatpush1.msra.mxu0 0.0
    %1558 = vmatprep.subr.mxu0 0.0
    %1559 = vmatpush1.msra.mxu0 0.0
    %1560 = vmatprep.subr.mxu0 0.0
    %1561 = vmatpush1.msra.mxu0 0.0
    %1562 = vmatprep.mubr.f32.mxu0 0.0
    %v1563 = vand.u32 %v1318, 4294901760
    %v1564 = vsub.f32 %v1318, %v1563
    %1565 = vmatmul.mubr.f32.gmra.mrb[0].mxu0 %v1564
    %v1566 = vpop.f32.mrb[0].mxu0
    %v1567 = vadd.f32 %v1487, %v1566
    %v1568 = vpop.f32.mrb[0].mxu0
    %1569 = vdwg.mxu0
    %1570 = vmatprep.subr.mxu0 0.0
    %v1571 = vand.u32 %v1308, 4294901760
    %1572 = vmatpush1.msra.mxu0 %v1571
    %1573 = vmatprep.subr.mxu0 0.0
    %v1574 = vand.u32 %v1309, 4294901760
    %1575 = vmatpush1.msra.mxu0 %v1574
    %1576 = vmatprep.subr.mxu0 0.0
    %v1577 = vand.u32 %v1310, 4294901760
    %1578 = vmatpush1.msra.mxu0 %v1577
    %1579 = vmatprep.subr.mxu0 0.0
    %v1580 = vand.u32 %v1311, 4294901760
    %1581 = vmatpush1.msra.mxu0 %v1580
    %1582 = vmatprep.subr.mxu0 0.0
    %1583 = vmatpush1.msra.mxu0 0.0
    %1584 = vmatprep.subr.mxu0 0.0
    %1585 = vmatpush1.msra.mxu0 0.0
    %1586 = vmatprep.subr.mxu0 0.0
    %1587 = vmatpush1.msra.mxu0 0.0
    %1588 = vmatprep.subr.mxu0 0.0
    %1589 = vmatpush1.msra.mxu0 0.0
    %1590 = vmatprep.subr.mxu0 0.0
    %1591 = vmatpush1.msra.mxu0 0.0
    %1592 = vmatprep.subr.mxu0 0.0
    %1593 = vmatpush1.msra.mxu0 0.0
    %1594 = vmatprep.subr.mxu0 0.0
    %1595 = vmatpush1.msra.mxu0 0.0
    %1596 = vmatprep.subr.mxu0 0.0
    %1597 = vmatpush1.msra.mxu0 0.0
    %1598 = vmatprep.subr.mxu0 0.0
    %1599 = vmatpush1.msra.mxu0 0.0
    %1600 = vmatprep.subr.mxu0 0.0
    %1601 = vmatpush1.msra.mxu0 0.0
    %1602 = vmatprep.subr.mxu0 0.0
    %1603 = vmatpush1.msra.mxu0 0.0
    %1604 = vmatprep.subr.mxu0 0.0
    %1605 = vmatpush1.msra.mxu0 0.0
    %1606 = vmatprep.subr.mxu0 0.0
    %1607 = vmatpush1.msra.mxu0 0.0
    %1608 = vmatprep.subr.mxu0 0.0
    %1609 = vmatpush1.msra.mxu0 0.0
    %1610 = vmatprep.subr.mxu0 0.0
    %1611 = vmatpush1.msra.mxu0 0.0
    %1612 = vmatprep.subr.mxu0 0.0
    %1613 = vmatpush1.msra.mxu0 0.0
    %1614 = vmatprep.subr.mxu0 0.0
    %1615 = vmatpush1.msra.mxu0 0.0
    %1616 = vmatprep.subr.mxu0 0.0
    %1617 = vmatpush1.msra.mxu0 0.0
    %1618 = vmatprep.subr.mxu0 0.0
    %1619 = vmatpush1.msra.mxu0 0.0
    %1620 = vmatprep.subr.mxu0 0.0
    %1621 = vmatpush1.msra.mxu0 0.0
    %1622 = vmatprep.subr.mxu0 0.0
    %1623 = vmatpush1.msra.mxu0 0.0
    %1624 = vmatprep.subr.mxu0 0.0
    %1625 = vmatpush1.msra.mxu0 0.0
    %1626 = vmatprep.subr.mxu0 0.0
    %1627 = vmatpush1.msra.mxu0 0.0
    %1628 = vmatprep.subr.mxu0 0.0
    %1629 = vmatpush1.msra.mxu0 0.0
    %1630 = vmatprep.subr.mxu0 0.0
    %1631 = vmatpush1.msra.mxu0 0.0
    %1632 = vmatprep.subr.mxu0 0.0
    %1633 = vmatpush1.msra.mxu0 0.0
    %1634 = vmatprep.subr.mxu0 0.0
    %1635 = vmatpush1.msra.mxu0 0.0
    %1636 = vmatprep.subr.mxu0 0.0
    %1637 = vmatpush1.msra.mxu0 0.0
    %1638 = vmatprep.mubr.f32.mxu0 0.0
    %v1639 = vand.u32 %v1318, 4294901760
    %v1640 = vsub.f32 %v1318, %v1639
    %v1641 = vand.u32 %v1640, 4294901760
    %1642 = vmatmul.mubr.f32.gmra.mrb[0].mxu0 %v1641
    %v1643 = vpop.f32.mrb[0].mxu0
    %v1644 = vadd.f32 %v1567, %v1643
    %v1645 = vpop.f32.mrb[0].mxu0
    %1646 = vdwg.mxu0
    %1647 = vmatprep.subr.mxu0 0.0
    %v1648 = vand.u32 %v1308, 4294901760
    %v1649 = vsub.f32 %v1308, %v1648
    %v1650 = vand.u32 %v1649, 4294901760
    %1651 = vmatpush1.msra.mxu0 %v1650
    %1652 = vmatprep.subr.mxu0 0.0
    %v1653 = vand.u32 %v1309, 4294901760
    %v1654 = vsub.f32 %v1309, %v1653
    %v1655 = vand.u32 %v1654, 4294901760
    %1656 = vmatpush1.msra.mxu0 %v1655
    %1657 = vmatprep.subr.mxu0 0.0
    %v1658 = vand.u32 %v1310, 4294901760
    %v1659 = vsub.f32 %v1310, %v1658
    %v1660 = vand.u32 %v1659, 4294901760
    %1661 = vmatpush1.msra.mxu0 %v1660
    %1662 = vmatprep.subr.mxu0 0.0
    %v1663 = vand.u32 %v1311, 4294901760
    %v1664 = vsub.f32 %v1311, %v1663
    %v1665 = vand.u32 %v1664, 4294901760
    %1666 = vmatpush1.msra.mxu0 %v1665
    %1667 = vmatprep.subr.mxu0 0.0
    %1668 = vmatpush1.msra.mxu0 0.0
    %1669 = vmatprep.subr.mxu0 0.0
    %1670 = vmatpush1.msra.mxu0 0.0
    %1671 = vmatprep.subr.mxu0 0.0
    %1672 = vmatpush1.msra.mxu0 0.0
    %1673 = vmatprep.subr.mxu0 0.0
    %1674 = vmatpush1.msra.mxu0 0.0
    %1675 = vmatprep.subr.mxu0 0.0
    %1676 = vmatpush1.msra.mxu0 0.0
    %1677 = vmatprep.subr.mxu0 0.0
    %1678 = vmatpush1.msra.mxu0 0.0
    %1679 = vmatprep.subr.mxu0 0.0
    %1680 = vmatpush1.msra.mxu0 0.0
    %1681 = vmatprep.subr.mxu0 0.0
    %1682 = vmatpush1.msra.mxu0 0.0
    %1683 = vmatprep.subr.mxu0 0.0
    %1684 = vmatpush1.msra.mxu0 0.0
    %1685 = vmatprep.subr.mxu0 0.0
    %1686 = vmatpush1.msra.mxu0 0.0
    %1687 = vmatprep.subr.mxu0 0.0
    %1688 = vmatpush1.msra.mxu0 0.0
    %1689 = vmatprep.subr.mxu0 0.0
    %1690 = vmatpush1.msra.mxu0 0.0
    %1691 = vmatprep.subr.mxu0 0.0
    %1692 = vmatpush1.msra.mxu0 0.0
    %1693 = vmatprep.subr.mxu0 0.0
    %1694 = vmatpush1.msra.mxu0 0.0
    %1695 = vmatprep.subr.mxu0 0.0
    %1696 = vmatpush1.msra.mxu0 0.0
    %1697 = vmatprep.subr.mxu0 0.0
    %1698 = vmatpush1.msra.mxu0 0.0
    %1699 = vmatprep.subr.mxu0 0.0
    %1700 = vmatpush1.msra.mxu0 0.0
    %1701 = vmatprep.subr.mxu0 0.0
    %1702 = vmatpush1.msra.mxu0 0.0
    %1703 = vmatprep.subr.mxu0 0.0
    %1704 = vmatpush1.msra.mxu0 0.0
    %1705 = vmatprep.subr.mxu0 0.0
    %1706 = vmatpush1.msra.mxu0 0.0
    %1707 = vmatprep.subr.mxu0 0.0
    %1708 = vmatpush1.msra.mxu0 0.0
    %1709 = vmatprep.subr.mxu0 0.0
    %1710 = vmatpush1.msra.mxu0 0.0
    %1711 = vmatprep.subr.mxu0 0.0
    %1712 = vmatpush1.msra.mxu0 0.0
    %1713 = vmatprep.subr.mxu0 0.0
    %1714 = vmatpush1.msra.mxu0 0.0
    %1715 = vmatprep.subr.mxu0 0.0
    %1716 = vmatpush1.msra.mxu0 0.0
    %1717 = vmatprep.subr.mxu0 0.0
    %1718 = vmatpush1.msra.mxu0 0.0
    %1719 = vmatprep.subr.mxu0 0.0
    %1720 = vmatpush1.msra.mxu0 0.0
    %1721 = vmatprep.subr.mxu0 0.0
    %1722 = vmatpush1.msra.mxu0 0.0
    %1723 = vmatprep.mubr.f32.mxu0 0.0
    %v1724 = vand.u32 %v1318, 4294901760
    %1725 = vmatmul.mubr.f32.gmra.mrb[0].mxu0 %v1724
    %v1726 = vpop.f32.mrb[0].mxu0
    %v1727 = vadd.f32 %v1644, %v1726
    %v1728 = vpop.f32.mrb[0].mxu0
    %1729 = vdwg.mxu0
    %1730 = vmatprep.subr.mxu0 0.0
    %v1731 = vand.u32 %v1308, 4294901760
    %1732 = vmatpush1.msra.mxu0 %v1731
    %1733 = vmatprep.subr.mxu0 0.0
    %v1734 = vand.u32 %v1309, 4294901760
    %1735 = vmatpush1.msra.mxu0 %v1734
    %1736 = vmatprep.subr.mxu0 0.0
    %v1737 = vand.u32 %v1310, 4294901760
    %1738 = vmatpush1.msra.mxu0 %v1737
    %1739 = vmatprep.subr.mxu0 0.0
    %v1740 = vand.u32 %v1311, 4294901760
    %1741 = vmatpush1.msra.mxu0 %v1740
    %1742 = vmatprep.subr.mxu0 0.0
    %1743 = vmatpush1.msra.mxu0 0.0
    %1744 = vmatprep.subr.mxu0 0.0
    %1745 = vmatpush1.msra.mxu0 0.0
    %1746 = vmatprep.subr.mxu0 0.0
    %1747 = vmatpush1.msra.mxu0 0.0
    %1748 = vmatprep.subr.mxu0 0.0
    %1749 = vmatpush1.msra.mxu0 0.0
    %1750 = vmatprep.subr.mxu0 0.0
    %1751 = vmatpush1.msra.mxu0 0.0
    %1752 = vmatprep.subr.mxu0 0.0
    %1753 = vmatpush1.msra.mxu0 0.0
    %1754 = vmatprep.subr.mxu0 0.0
    %1755 = vmatpush1.msra.mxu0 0.0
    %1756 = vmatprep.subr.mxu0 0.0
    %1757 = vmatpush1.msra.mxu0 0.0
    %1758 = vmatprep.subr.mxu0 0.0
    %1759 = vmatpush1.msra.mxu0 0.0
    %1760 = vmatprep.subr.mxu0 0.0
    %1761 = vmatpush1.msra.mxu0 0.0
    %1762 = vmatprep.subr.mxu0 0.0
    %1763 = vmatpush1.msra.mxu0 0.0
    %1764 = vmatprep.subr.mxu0 0.0
    %1765 = vmatpush1.msra.mxu0 0.0
    %1766 = vmatprep.subr.mxu0 0.0
    %1767 = vmatpush1.msra.mxu0 0.0
    %1768 = vmatprep.subr.mxu0 0.0
    %1769 = vmatpush1.msra.mxu0 0.0
    %1770 = vmatprep.subr.mxu0 0.0
    %1771 = vmatpush1.msra.mxu0 0.0
    %1772 = vmatprep.subr.mxu0 0.0
    %1773 = vmatpush1.msra.mxu0 0.0
    %1774 = vmatprep.subr.mxu0 0.0
    %1775 = vmatpush1.msra.mxu0 0.0
    %1776 = vmatprep.subr.mxu0 0.0
    %1777 = vmatpush1.msra.mxu0 0.0
    %1778 = vmatprep.subr.mxu0 0.0
    %1779 = vmatpush1.msra.mxu0 0.0
    %1780 = vmatprep.subr.mxu0 0.0
    %1781 = vmatpush1.msra.mxu0 0.0
    %1782 = vmatprep.subr.mxu0 0.0
    %1783 = vmatpush1.msra.mxu0 0.0
    %1784 = vmatprep.subr.mxu0 0.0
    %1785 = vmatpush1.msra.mxu0 0.0
    %1786 = vmatprep.subr.mxu0 0.0
    %1787 = vmatpush1.msra.mxu0 0.0
    %1788 = vmatprep.subr.mxu0 0.0
    %1789 = vmatpush1.msra.mxu0 0.0
    %1790 = vmatprep.subr.mxu0 0.0
    %1791 = vmatpush1.msra.mxu0 0.0
    %1792 = vmatprep.subr.mxu0 0.0
    %1793 = vmatpush1.msra.mxu0 0.0
    %1794 = vmatprep.subr.mxu0 0.0
    %1795 = vmatpush1.msra.mxu0 0.0
    %1796 = vmatprep.subr.mxu0 0.0
    %1797 = vmatpush1.msra.mxu0 0.0
    %1798 = vmatprep.mubr.f32.mxu0 0.0
    %v1799 = vand.u32 %v1318, 4294901760
    %1800 = vmatmul.mubr.f32.gmra.mrb[0].mxu0 %v1799
    %v1801 = vpop.f32.mrb[0].mxu0
    %v1802 = vadd.f32 %v1727, %v1801
    %v1803 = vpop.f32.mrb[0].mxu0
    %1804 = vdwg.mxu0
    %v1805 = vtanh.pop %v1802
    %v1806 = vmul.f32 %v1805, 2.0
    %1807 = vst [vmem:[%s2] sm:$0xff] %v1806
    // Predicated region
    $region14: #{reinforce_forward.1} parent=1 // pred_check
      _
    $region15: #{reinforce_forward.1} parent=1 // pred_check_branch
      %1809 = sbr.rel (0) target = $region17
    $region16: #{reinforce_forward.1} parent=1 // pred_region
      _
    $region17: #{reinforce_forward.1} parent=1 // pred_fallthru
      _
    // Predicated region
    $region18: #{reinforce_forward.1} parent=1 // pred_check
      _
    $region19: #{reinforce_forward.1} parent=1 // pred_check_branch
      %1811 = sbr.rel (0) target = $region21
    $region20: #{reinforce_forward.1} parent=1 // pred_region
      _
    $region21: #{reinforce_forward.1} parent=1 // pred_fallthru
      _
    %1812 = vsyncpa [#allocation3], 1

</llo_original>
